<compile_context>
chip_gen: v7x
topology: tpu7x:2x2x1
jax: 0.10.0
libtpu: 0.0.40
codegen_flags: <defaults>
</compile_context>

<pallas_src>
import jax
import jax.numpy as jnp
from jax.experimental import pallas as pl
from jax.experimental.pallas import tpu as pltpu


# ----------------------------------------------------------------------------
# Pallas kernel: one LSTM layer, Tc timesteps per grid step.
# Fused gate order along the 4H axis: [i, f, o, g].
# ----------------------------------------------------------------------------
def lstm_layer_kernel(x_ref, wih_hbm, whh_hbm, b_hbm, out_ref,
                      h_scr, c_scr, wih_scr, whh_scr, b_scr, dma_sem):
    step = pl.program_id(0)
    Tc = x_ref.shape[0]
    H = h_scr.shape[-1]

    @pl.when(step == 0)
    def _():
        # Single-buffered weight residency: DMA each constant operand HBM->VMEM
        # exactly once; they persist in scratch for all remaining grid steps.
        copies = (
            pltpu.make_async_copy(wih_hbm, wih_scr, dma_sem.at[0]),
            pltpu.make_async_copy(whh_hbm, whh_scr, dma_sem.at[1]),
            pltpu.make_async_copy(b_hbm, b_scr, dma_sem.at[2]),
        )
        for cp in copies:
            cp.start()
        for cp in copies:
            cp.wait()
        h_scr[...] = jnp.zeros_like(h_scr)
        c_scr[...] = jnp.zeros_like(c_scr)

    # Hoisted once per grid step (not per timestep).
    w_ih = wih_scr[...]          # (D, 4H)
    w_hh = whh_scr[...]          # (H, 4H)
    bias = b_scr[...]            # (1, 4H) -> broadcasts over batch

    def body(tt, carry):
        h_prev, c_prev = carry
        x_t = x_ref[tt]                                                # (B, D)
        z = (jnp.dot(x_t, w_ih, preferred_element_type=jnp.float32)
             + jnp.dot(h_prev, w_hh, preferred_element_type=jnp.float32)
             + bias)                                                   # (B, 4H)
        s = jax.nn.sigmoid(z[:, :3 * H])      # fused sigmoid over [i | f | o]
        g_g = jnp.tanh(z[:, 3 * H:])          # single tanh over g
        i_g = s[:, :H]
        f_g = s[:, H:2 * H]
        o_g = s[:, 2 * H:]
        c_new = f_g * c_prev + i_g * g_g
        h_new = o_g * jnp.tanh(c_new)
        out_ref[tt] = h_new.astype(out_ref.dtype)
        return h_new, c_new

    # Tc is small & static: fully unrolled recurrence keeps h/c in vregs.
    h_fin, c_fin = jax.lax.fori_loop(
        0, Tc, body, (h_scr[...], c_scr[...]), unroll=True)
    h_scr[...] = h_fin
    c_scr[...] = c_fin


def _pick_time_chunk(seq_len, max_chunk):
    for c in range(min(seq_len, max_chunk), 0, -1):
        if seq_len % c == 0:
            return c
    return 1


def lstm_layer_pallas(x_tm, w_ih, w_hh, b, *, max_time_chunk=8):
    """x_tm: (T, B, D) time-major. w_ih: (D, 4H), w_hh: (H, 4H), b: (1, 4H).
    Returns the hidden-state sequence (T, B, H)."""
    T, B, D = x_tm.shape
    H = w_hh.shape[0]
    Tc = _pick_time_chunk(T, max_time_chunk)

    return pl.pallas_call(
        lstm_layer_kernel,
        out_shape=jax.ShapeDtypeStruct((T, B, H), jnp.float32),
        grid_spec=pltpu.PrefetchScalarGridSpec(
            num_scalar_prefetch=0,
            grid=(T // Tc,),
            in_specs=[
                pl.BlockSpec((Tc, B, D), lambda s: (s, 0, 0)),  # x chunk
                pl.BlockSpec(memory_space=pl.ANY),              # W_ih (HBM)
                pl.BlockSpec(memory_space=pl.ANY),              # W_hh (HBM)
                pl.BlockSpec(memory_space=pl.ANY),              # bias (HBM)
            ],
            out_specs=pl.BlockSpec((Tc, B, H), lambda s: (s, 0, 0)),
            scratch_shapes=[
                pltpu.VMEM((B, H), jnp.float32),        # h carry
                pltpu.VMEM((B, H), jnp.float32),        # c carry
                pltpu.VMEM((D, 4 * H), jnp.float32),    # W_ih resident copy
                pltpu.VMEM((H, 4 * H), jnp.float32),    # W_hh resident copy
                pltpu.VMEM((1, 4 * H), jnp.float32),    # bias resident copy
                pltpu.SemaphoreType.DMA((3,)),          # weight-load sems
            ],
        ),
        # Time axis MUST stay sequential (carried state). For production
        # shapes on v7x, add a leading "parallel" batch-block axis instead.
        compiler_params=pltpu.CompilerParams(
            dimension_semantics=("arbitrary",)),
    )(x_tm, w_ih, w_hh, b)


# ----------------------------------------------------------------------------
# Module forward: stacked LSTM -> dropout (eval identity) -> permute(0, 2, 1)
# ----------------------------------------------------------------------------
def lstm_regularization_forward(x, params):
    """x: (B, T, input_size) batch-first, like nn.LSTM(batch_first=True)."""
    h = jnp.transpose(x, (1, 0, 2)).astype(jnp.float32)    # -> (T, B, D)
    for (w_ih, w_hh, b) in params:
        h = lstm_layer_pallas(h, w_ih, w_hh, b)             # (T, B, H) time-major
    # TODO(synk): nn.Dropout(0.5) is identity in eval mode; training-mode random
    #             masking (pltpu.prng_seed/prng_random_bits + scale 2.0) omitted.
    # Single transpose: (T, B, H) -> (B, H, T) == batch-first permute(0, 2, 1).
    return jnp.transpose(h, (1, 2, 0))


# ----------------------------------------------------------------------------
# Deterministic parameter init, fused-gate layout, gate order [i, f, o, g].
# (PyTorch nn.LSTM stores (4H, D) in order [i, f, g, o]; loading a real
#  checkpoint would require a transpose + gate reorder.)
# ----------------------------------------------------------------------------
def init_params(key, input_size, hidden_size, num_layers):
    k = 1.0 / (hidden_size ** 0.5)
    params = []
    for layer in range(num_layers):
        d_in = input_size if layer == 0 else hidden_size
        key, k1, k2, k3, k4 = jax.random.split(key, 5)
        w_ih = jax.random.uniform(k1, (d_in, 4 * hidden_size), jnp.float32, -k, k)
        w_hh = jax.random.uniform(k2, (hidden_size, 4 * hidden_size), jnp.float32, -k, k)
        b_ih = jax.random.uniform(k3, (1, 4 * hidden_size), jnp.float32, -k, k)
        b_hh = jax.random.uniform(k4, (1, 4 * hidden_size), jnp.float32, -k, k)
        params.append((w_ih, w_hh, b_ih + b_hh))
    return params


# Pure-JAX reference (lax.scan) for the correctness check (same fused layout).
def ref_forward(x, params):
    h_bt = x.astype(jnp.float32)
    B = x.shape[0]
    for (w_ih, w_hh, b) in params:
        H = w_hh.shape[0]

        def step(carry, x_t):
            h, c = carry
            z = x_t @ w_ih + h @ w_hh + b
            i_g = jax.nn.sigmoid(z[:, :H])
            f_g = jax.nn.sigmoid(z[:, H:2 * H])
            o_g = jax.nn.sigmoid(z[:, 2 * H:3 * H])
            g_g = jnp.tanh(z[:, 3 * H:])
            c = f_g * c + i_g * g_g
            h = o_g * jnp.tanh(c)
            return (h, c), h

        x_tm = jnp.transpose(h_bt, (1, 0, 2))
        init = (jnp.zeros((B, H), jnp.float32), jnp.zeros((B, H), jnp.float32))
        _, hs = jax.lax.scan(step, init, x_tm)
        h_bt = jnp.transpose(hs, (1, 0, 2))
    return jnp.transpose(h_bt, (0, 2, 1))


if __name__ == "__main__":
    batch, seq_len, input_size, hidden_size, num_layers = 2, 8, 16, 32, 2

    key = jax.random.PRNGKey(0)
    key, xk = jax.random.split(key)
    x = jax.random.normal(xk, (batch, seq_len, input_size), jnp.float32)
    params = init_params(key, input_size, hidden_size, num_layers)

    out = jax.block_until_ready(lstm_regularization_forward(x, params))
    assert out.shape == (batch, hidden_size, seq_len), out.shape

    ref = jax.block_until_ready(ref_forward(x, params))
    # Small tolerance headroom for MXU vs XLA f32-dot rounding differences.
    assert jnp.allclose(out, ref, atol=1e-4, rtol=1e-4), "mismatch vs reference"

    print("KERNEL_OK")
</pallas_src>

<mosaic_0001>
module attributes {stable_mosaic.version = 11 : i64} {
  func.func @lstm_layer_kernel(%arg0: i32, %arg1: memref<8x2x16xf32, #tpu.memory_space<vmem>>, %arg2: memref<16x128xf32, #tpu.memory_space<any>>, %arg3: memref<32x128xf32, #tpu.memory_space<any>>, %arg4: memref<1x128xf32, #tpu.memory_space<any>>, %arg5: memref<8x2x32xf32, #tpu.memory_space<vmem>>, %arg6: memref<2x32xf32, #tpu.memory_space<vmem>>, %arg7: memref<2x32xf32, #tpu.memory_space<vmem>>, %arg8: memref<16x128xf32, #tpu.memory_space<vmem>>, %arg9: memref<32x128xf32, #tpu.memory_space<vmem>>, %arg10: memref<1x128xf32, #tpu.memory_space<vmem>>, %arg11: memref<3x!tpu.dma_semaphore, #tpu.memory_space<semaphore_mem>>) attributes {dimension_semantics = [#tpu.dimension_semantics<arbitrary>], iteration_bounds = array<i64: 1>, scalar_prefetch = 0 : i64, scratch_operands = 6 : i64, tpu.core_type = #tpu.core_type<tc>, window_params = [{transform_indices = @transform_0, window_bounds = array<i64: 8, 2, 16>}, {}, {}, {}, {transform_indices = @transform_4, window_bounds = array<i64: 8, 2, 32>}]} {
    %c0_i32 = arith.constant 0 : i32
    %0 = arith.cmpi eq, %arg0, %c0_i32 : i32
    %1 = arith.extui %0 : i1 to i32
    %c0_i32_0 = arith.constant 0 : i32
    %2 = arith.cmpi ne, %1, %c0_i32_0 : i32
    scf.if %2 {
      %c0_i32_70 = arith.constant 0 : i32
      %234 = tpu.memref_slice %arg11[%c0_i32_70] : memref<3x!tpu.dma_semaphore, #tpu.memory_space<semaphore_mem>> -> memref<1x!tpu.dma_semaphore, #tpu.memory_space<semaphore_mem>>
      %235 = tpu.memref_squeeze %234 : memref<1x!tpu.dma_semaphore, #tpu.memory_space<semaphore_mem>> -> memref<!tpu.dma_semaphore, #tpu.memory_space<semaphore_mem>>
      tpu.enqueue_dma source(%arg2 : memref<16x128xf32, #tpu.memory_space<any>>) target(%arg8 : memref<16x128xf32, #tpu.memory_space<vmem>>) target_semaphore(%235 : memref<!tpu.dma_semaphore, #tpu.memory_space<semaphore_mem>>)
      %c1_i32_71 = arith.constant 1 : i32
      %236 = tpu.memref_slice %arg11[%c1_i32_71] : memref<3x!tpu.dma_semaphore, #tpu.memory_space<semaphore_mem>> -> memref<1x!tpu.dma_semaphore, #tpu.memory_space<semaphore_mem>>
      %237 = tpu.memref_squeeze %236 : memref<1x!tpu.dma_semaphore, #tpu.memory_space<semaphore_mem>> -> memref<!tpu.dma_semaphore, #tpu.memory_space<semaphore_mem>>
      tpu.enqueue_dma source(%arg3 : memref<32x128xf32, #tpu.memory_space<any>>) target(%arg9 : memref<32x128xf32, #tpu.memory_space<vmem>>) target_semaphore(%237 : memref<!tpu.dma_semaphore, #tpu.memory_space<semaphore_mem>>)
      %c2_i32_72 = arith.constant 2 : i32
      %238 = tpu.memref_slice %arg11[%c2_i32_72] : memref<3x!tpu.dma_semaphore, #tpu.memory_space<semaphore_mem>> -> memref<1x!tpu.dma_semaphore, #tpu.memory_space<semaphore_mem>>
      %239 = tpu.memref_squeeze %238 : memref<1x!tpu.dma_semaphore, #tpu.memory_space<semaphore_mem>> -> memref<!tpu.dma_semaphore, #tpu.memory_space<semaphore_mem>>
      tpu.enqueue_dma source(%arg4 : memref<1x128xf32, #tpu.memory_space<any>>) target(%arg10 : memref<1x128xf32, #tpu.memory_space<vmem>>) target_semaphore(%239 : memref<!tpu.dma_semaphore, #tpu.memory_space<semaphore_mem>>)
      %c0_i32_73 = arith.constant 0 : i32
      %240 = tpu.memref_slice %arg11[%c0_i32_73] : memref<3x!tpu.dma_semaphore, #tpu.memory_space<semaphore_mem>> -> memref<1x!tpu.dma_semaphore, #tpu.memory_space<semaphore_mem>>
      %241 = tpu.memref_squeeze %240 : memref<1x!tpu.dma_semaphore, #tpu.memory_space<semaphore_mem>> -> memref<!tpu.dma_semaphore, #tpu.memory_space<semaphore_mem>>
      tpu.wait_dma2 semaphore(%241 : memref<!tpu.dma_semaphore, #tpu.memory_space<semaphore_mem>>) src(%arg2 : memref<16x128xf32, #tpu.memory_space<any>>) dst(%arg8 : memref<16x128xf32, #tpu.memory_space<vmem>>)
      %c1_i32_74 = arith.constant 1 : i32
      %242 = tpu.memref_slice %arg11[%c1_i32_74] : memref<3x!tpu.dma_semaphore, #tpu.memory_space<semaphore_mem>> -> memref<1x!tpu.dma_semaphore, #tpu.memory_space<semaphore_mem>>
      %243 = tpu.memref_squeeze %242 : memref<1x!tpu.dma_semaphore, #tpu.memory_space<semaphore_mem>> -> memref<!tpu.dma_semaphore, #tpu.memory_space<semaphore_mem>>
      tpu.wait_dma2 semaphore(%243 : memref<!tpu.dma_semaphore, #tpu.memory_space<semaphore_mem>>) src(%arg3 : memref<32x128xf32, #tpu.memory_space<any>>) dst(%arg9 : memref<32x128xf32, #tpu.memory_space<vmem>>)
      %c2_i32_75 = arith.constant 2 : i32
      %244 = tpu.memref_slice %arg11[%c2_i32_75] : memref<3x!tpu.dma_semaphore, #tpu.memory_space<semaphore_mem>> -> memref<1x!tpu.dma_semaphore, #tpu.memory_space<semaphore_mem>>
      %245 = tpu.memref_squeeze %244 : memref<1x!tpu.dma_semaphore, #tpu.memory_space<semaphore_mem>> -> memref<!tpu.dma_semaphore, #tpu.memory_space<semaphore_mem>>
      tpu.wait_dma2 semaphore(%245 : memref<!tpu.dma_semaphore, #tpu.memory_space<semaphore_mem>>) src(%arg4 : memref<1x128xf32, #tpu.memory_space<any>>) dst(%arg10 : memref<1x128xf32, #tpu.memory_space<vmem>>)
      %cst_76 = arith.constant 0.000000e+00 : f32
      %246 = vector.broadcast %cst_76 : f32 to vector<2x32xf32>
      %c0_77 = arith.constant 0 : index
      %c0_78 = arith.constant 0 : index
      %247 = vector.load %arg6[%c0_77, %c0_78] : memref<2x32xf32, #tpu.memory_space<vmem>>, vector<2x32xf32>
      tpu.vector_store %arg6[%c0_77, %c0_78], %246 {strides = array<i32>} : memref<2x32xf32, #tpu.memory_space<vmem>>, vector<2x32xf32>,
      %cst_79 = arith.constant 0.000000e+00 : f32
      %248 = vector.broadcast %cst_79 : f32 to vector<2x32xf32>
      %c0_80 = arith.constant 0 : index
      %c0_81 = arith.constant 0 : index
      %249 = vector.load %arg7[%c0_80, %c0_81] : memref<2x32xf32, #tpu.memory_space<vmem>>, vector<2x32xf32>
      tpu.vector_store %arg7[%c0_80, %c0_81], %248 {strides = array<i32>} : memref<2x32xf32, #tpu.memory_space<vmem>>, vector<2x32xf32>,
    } else {
    }
    %c0 = arith.constant 0 : index
    %c0_1 = arith.constant 0 : index
    %3 = vector.load %arg8[%c0, %c0_1] : memref<16x128xf32, #tpu.memory_space<vmem>>, vector<16x128xf32>
    %c0_2 = arith.constant 0 : index
    %c0_3 = arith.constant 0 : index
    %4 = vector.load %arg9[%c0_2, %c0_3] : memref<32x128xf32, #tpu.memory_space<vmem>>, vector<32x128xf32>
    %c0_4 = arith.constant 0 : index
    %c0_5 = arith.constant 0 : index
    %5 = vector.load %arg10[%c0_4, %c0_5] : memref<1x128xf32, #tpu.memory_space<vmem>>, vector<1x128xf32>
    %c0_6 = arith.constant 0 : index
    %c0_7 = arith.constant 0 : index
    %6 = vector.load %arg6[%c0_6, %c0_7] : memref<2x32xf32, #tpu.memory_space<vmem>>, vector<2x32xf32>
    %c0_8 = arith.constant 0 : index
    %c0_9 = arith.constant 0 : index
    %7 = vector.load %arg7[%c0_8, %c0_9] : memref<2x32xf32, #tpu.memory_space<vmem>>, vector<2x32xf32>
    %c0_i32_10 = arith.constant 0 : i32
    %8 = arith.index_cast %c0_i32_10 : i32 to index
    %c0_11 = arith.constant 0 : index
    %c0_12 = arith.constant 0 : index
    %9 = vector.load %arg1[%8, %c0_11, %c0_12] : memref<8x2x16xf32, #tpu.memory_space<vmem>>, vector<1x2x16xf32>
    %10 = vector.shape_cast %9 : vector<1x2x16xf32> to vector<2x16xf32>
    %cst = arith.constant dense<0.000000e+00> : vector<2x128xf32>
    %11 = tpu.matmul %10, %3, %cst {dimension_numbers = #tpu.dot_dimension_numbers<[1], [0], [0], [1], [0, 0, 1, 1], [], []>} : vector<2x16xf32>, vector<16x128xf32>, vector<2x128xf32> -> vector<2x128xf32>
    %cst_13 = arith.constant dense<0.000000e+00> : vector<2x128xf32>
    %12 = tpu.matmul %6, %4, %cst_13 {dimension_numbers = #tpu.dot_dimension_numbers<[1], [0], [0], [1], [0, 0, 1, 1], [], []>} : vector<2x32xf32>, vector<32x128xf32>, vector<2x128xf32> -> vector<2x128xf32>
    %13 = arith.addf %11, %12 : vector<2x128xf32>
    %14 = vector.broadcast %5 : vector<1x128xf32> to vector<2x128xf32>
    %15 = arith.addf %13, %14 : vector<2x128xf32>
    %16 = vector.extract_strided_slice %15 {offsets = [0, 0], sizes = [2, 96], strides = [1, 1]} : vector<2x128xf32> to vector<2x96xf32>
    %17 = arith.negf %16 : vector<2x96xf32>
    %18 = math.exp %17 : vector<2x96xf32>
    %cst_14 = arith.constant 1.000000e+00 : f32
    %19 = vector.broadcast %cst_14 : f32 to vector<2x96xf32>
    %20 = arith.addf %19, %18 : vector<2x96xf32>
    %21 = arith.divf %19, %20 : vector<2x96xf32>
    %22 = vector.extract_strided_slice %15 {offsets = [0, 96], sizes = [2, 32], strides = [1, 1]} : vector<2x128xf32> to vector<2x32xf32>
    %23 = math.tanh %22 : vector<2x32xf32>
    %24 = vector.extract_strided_slice %21 {offsets = [0, 0], sizes = [2, 32], strides = [1, 1]} : vector<2x96xf32> to vector<2x32xf32>
    %25 = vector.extract_strided_slice %21 {offsets = [0, 32], sizes = [2, 32], strides = [1, 1]} : vector<2x96xf32> to vector<2x32xf32>
    %26 = vector.extract_strided_slice %21 {offsets = [0, 64], sizes = [2, 32], strides = [1, 1]} : vector<2x96xf32> to vector<2x32xf32>
    %27 = arith.mulf %25, %7 : vector<2x32xf32>
    %28 = arith.mulf %24, %23 : vector<2x32xf32>
    %29 = arith.addf %27, %28 : vector<2x32xf32>
    %30 = math.tanh %29 : vector<2x32xf32>
    %31 = arith.mulf %26, %30 : vector<2x32xf32>
    %32 = arith.index_cast %c0_i32_10 : i32 to index
    %c0_15 = arith.constant 0 : index
    %c0_16 = arith.constant 0 : index
    %33 = vector.load %arg5[%32, %c0_15, %c0_16] : memref<8x2x32xf32, #tpu.memory_space<vmem>>, vector<1x2x32xf32>
    %34 = vector.shape_cast %33 : vector<1x2x32xf32> to vector<2x32xf32>
    %35 = vector.shape_cast %31 : vector<2x32xf32> to vector<1x2x32xf32>
    tpu.vector_store %arg5[%32, %c0_15, %c0_16], %35 {strides = array<i32>} : memref<8x2x32xf32, #tpu.memory_space<vmem>>, vector<1x2x32xf32>,
    %c1_i32 = arith.constant 1 : i32
    %36 = arith.index_cast %c1_i32 : i32 to index
    %c0_17 = arith.constant 0 : index
    %c0_18 = arith.constant 0 : index
    %37 = vector.load %arg1[%36, %c0_17, %c0_18] : memref<8x2x16xf32, #tpu.memory_space<vmem>>, vector<1x2x16xf32>
    %38 = vector.shape_cast %37 : vector<1x2x16xf32> to vector<2x16xf32>
    %cst_19 = arith.constant dense<0.000000e+00> : vector<2x128xf32>
    %39 = tpu.matmul %38, %3, %cst_19 {dimension_numbers = #tpu.dot_dimension_numbers<[1], [0], [0], [1], [0, 0, 1, 1], [], []>} : vector<2x16xf32>, vector<16x128xf32>, vector<2x128xf32> -> vector<2x128xf32>
    %cst_20 = arith.constant dense<0.000000e+00> : vector<2x128xf32>
    %40 = tpu.matmul %31, %4, %cst_20 {dimension_numbers = #tpu.dot_dimension_numbers<[1], [0], [0], [1], [0, 0, 1, 1], [], []>} : vector<2x32xf32>, vector<32x128xf32>, vector<2x128xf32> -> vector<2x128xf32>
    %41 = arith.addf %39, %40 : vector<2x128xf32>
    %42 = vector.broadcast %5 : vector<1x128xf32> to vector<2x128xf32>
    %43 = arith.addf %41, %42 : vector<2x128xf32>
    %44 = vector.extract_strided_slice %43 {offsets = [0, 0], sizes = [2, 96], strides = [1, 1]} : vector<2x128xf32> to vector<2x96xf32>
    %45 = arith.negf %44 : vector<2x96xf32>
    %46 = math.exp %45 : vector<2x96xf32>
    %cst_21 = arith.constant 1.000000e+00 : f32
    %47 = vector.broadcast %cst_21 : f32 to vector<2x96xf32>
    %48 = arith.addf %47, %46 : vector<2x96xf32>
    %49 = arith.divf %47, %48 : vector<2x96xf32>
    %50 = vector.extract_strided_slice %43 {offsets = [0, 96], sizes = [2, 32], strides = [1, 1]} : vector<2x128xf32> to vector<2x32xf32>
    %51 = math.tanh %50 : vector<2x32xf32>
    %52 = vector.extract_strided_slice %49 {offsets = [0, 0], sizes = [2, 32], strides = [1, 1]} : vector<2x96xf32> to vector<2x32xf32>
    %53 = vector.extract_strided_slice %49 {offsets = [0, 32], sizes = [2, 32], strides = [1, 1]} : vector<2x96xf32> to vector<2x32xf32>
    %54 = vector.extract_strided_slice %49 {offsets = [0, 64], sizes = [2, 32], strides = [1, 1]} : vector<2x96xf32> to vector<2x32xf32>
    %55 = arith.mulf %53, %29 : vector<2x32xf32>
    %56 = arith.mulf %52, %51 : vector<2x32xf32>
    %57 = arith.addf %55, %56 : vector<2x32xf32>
    %58 = math.tanh %57 : vector<2x32xf32>
    %59 = arith.mulf %54, %58 : vector<2x32xf32>
    %60 = arith.index_cast %c1_i32 : i32 to index
    %c0_22 = arith.constant 0 : index
    %c0_23 = arith.constant 0 : index
    %61 = vector.load %arg5[%60, %c0_22, %c0_23] : memref<8x2x32xf32, #tpu.memory_space<vmem>>, vector<1x2x32xf32>
    %62 = vector.shape_cast %61 : vector<1x2x32xf32> to vector<2x32xf32>
    %63 = vector.shape_cast %59 : vector<2x32xf32> to vector<1x2x32xf32>
    tpu.vector_store %arg5[%60, %c0_22, %c0_23], %63 {strides = array<i32>} : memref<8x2x32xf32, #tpu.memory_space<vmem>>, vector<1x2x32xf32>,
    %c2_i32 = arith.constant 2 : i32
    %64 = arith.index_cast %c2_i32 : i32 to index
    %c0_24 = arith.constant 0 : index
    %c0_25 = arith.constant 0 : index
    %65 = vector.load %arg1[%64, %c0_24, %c0_25] : memref<8x2x16xf32, #tpu.memory_space<vmem>>, vector<1x2x16xf32>
    %66 = vector.shape_cast %65 : vector<1x2x16xf32> to vector<2x16xf32>
    %cst_26 = arith.constant dense<0.000000e+00> : vector<2x128xf32>
    %67 = tpu.matmul %66, %3, %cst_26 {dimension_numbers = #tpu.dot_dimension_numbers<[1], [0], [0], [1], [0, 0, 1, 1], [], []>} : vector<2x16xf32>, vector<16x128xf32>, vector<2x128xf32> -> vector<2x128xf32>
    %cst_27 = arith.constant dense<0.000000e+00> : vector<2x128xf32>
    %68 = tpu.matmul %59, %4, %cst_27 {dimension_numbers = #tpu.dot_dimension_numbers<[1], [0], [0], [1], [0, 0, 1, 1], [], []>} : vector<2x32xf32>, vector<32x128xf32>, vector<2x128xf32> -> vector<2x128xf32>
    %69 = arith.addf %67, %68 : vector<2x128xf32>
    %70 = vector.broadcast %5 : vector<1x128xf32> to vector<2x128xf32>
    %71 = arith.addf %69, %70 : vector<2x128xf32>
    %72 = vector.extract_strided_slice %71 {offsets = [0, 0], sizes = [2, 96], strides = [1, 1]} : vector<2x128xf32> to vector<2x96xf32>
    %73 = arith.negf %72 : vector<2x96xf32>
    %74 = math.exp %73 : vector<2x96xf32>
    %cst_28 = arith.constant 1.000000e+00 : f32
    %75 = vector.broadcast %cst_28 : f32 to vector<2x96xf32>
    %76 = arith.addf %75, %74 : vector<2x96xf32>
    %77 = arith.divf %75, %76 : vector<2x96xf32>
    %78 = vector.extract_strided_slice %71 {offsets = [0, 96], sizes = [2, 32], strides = [1, 1]} : vector<2x128xf32> to vector<2x32xf32>
    %79 = math.tanh %78 : vector<2x32xf32>
    %80 = vector.extract_strided_slice %77 {offsets = [0, 0], sizes = [2, 32], strides = [1, 1]} : vector<2x96xf32> to vector<2x32xf32>
    %81 = vector.extract_strided_slice %77 {offsets = [0, 32], sizes = [2, 32], strides = [1, 1]} : vector<2x96xf32> to vector<2x32xf32>
    %82 = vector.extract_strided_slice %77 {offsets = [0, 64], sizes = [2, 32], strides = [1, 1]} : vector<2x96xf32> to vector<2x32xf32>
    %83 = arith.mulf %81, %57 : vector<2x32xf32>
    %84 = arith.mulf %80, %79 : vector<2x32xf32>
    %85 = arith.addf %83, %84 : vector<2x32xf32>
    %86 = math.tanh %85 : vector<2x32xf32>
    %87 = arith.mulf %82, %86 : vector<2x32xf32>
    %88 = arith.index_cast %c2_i32 : i32 to index
    %c0_29 = arith.constant 0 : index
    %c0_30 = arith.constant 0 : index
    %89 = vector.load %arg5[%88, %c0_29, %c0_30] : memref<8x2x32xf32, #tpu.memory_space<vmem>>, vector<1x2x32xf32>
    %90 = vector.shape_cast %89 : vector<1x2x32xf32> to vector<2x32xf32>
    %91 = vector.shape_cast %87 : vector<2x32xf32> to vector<1x2x32xf32>
    tpu.vector_store %arg5[%88, %c0_29, %c0_30], %91 {strides = array<i32>} : memref<8x2x32xf32, #tpu.memory_space<vmem>>, vector<1x2x32xf32>,
    %c3_i32 = arith.constant 3 : i32
    %92 = arith.index_cast %c3_i32 : i32 to index
    %c0_31 = arith.constant 0 : index
    %c0_32 = arith.constant 0 : index
    %93 = vector.load %arg1[%92, %c0_31, %c0_32] : memref<8x2x16xf32, #tpu.memory_space<vmem>>, vector<1x2x16xf32>
    %94 = vector.shape_cast %93 : vector<1x2x16xf32> to vector<2x16xf32>
    %cst_33 = arith.constant dense<0.000000e+00> : vector<2x128xf32>
    %95 = tpu.matmul %94, %3, %cst_33 {dimension_numbers = #tpu.dot_dimension_numbers<[1], [0], [0], [1], [0, 0, 1, 1], [], []>} : vector<2x16xf32>, vector<16x128xf32>, vector<2x128xf32> -> vector<2x128xf32>
    %cst_34 = arith.constant dense<0.000000e+00> : vector<2x128xf32>
    %96 = tpu.matmul %87, %4, %cst_34 {dimension_numbers = #tpu.dot_dimension_numbers<[1], [0], [0], [1], [0, 0, 1, 1], [], []>} : vector<2x32xf32>, vector<32x128xf32>, vector<2x128xf32> -> vector<2x128xf32>
    %97 = arith.addf %95, %96 : vector<2x128xf32>
    %98 = vector.broadcast %5 : vector<1x128xf32> to vector<2x128xf32>
    %99 = arith.addf %97, %98 : vector<2x128xf32>
    %100 = vector.extract_strided_slice %99 {offsets = [0, 0], sizes = [2, 96], strides = [1, 1]} : vector<2x128xf32> to vector<2x96xf32>
    %101 = arith.negf %100 : vector<2x96xf32>
    %102 = math.exp %101 : vector<2x96xf32>
    %cst_35 = arith.constant 1.000000e+00 : f32
    %103 = vector.broadcast %cst_35 : f32 to vector<2x96xf32>
    %104 = arith.addf %103, %102 : vector<2x96xf32>
    %105 = arith.divf %103, %104 : vector<2x96xf32>
    %106 = vector.extract_strided_slice %99 {offsets = [0, 96], sizes = [2, 32], strides = [1, 1]} : vector<2x128xf32> to vector<2x32xf32>
    %107 = math.tanh %106 : vector<2x32xf32>
    %108 = vector.extract_strided_slice %105 {offsets = [0, 0], sizes = [2, 32], strides = [1, 1]} : vector<2x96xf32> to vector<2x32xf32>
    %109 = vector.extract_strided_slice %105 {offsets = [0, 32], sizes = [2, 32], strides = [1, 1]} : vector<2x96xf32> to vector<2x32xf32>
    %110 = vector.extract_strided_slice %105 {offsets = [0, 64], sizes = [2, 32], strides = [1, 1]} : vector<2x96xf32> to vector<2x32xf32>
    %111 = arith.mulf %109, %85 : vector<2x32xf32>
    %112 = arith.mulf %108, %107 : vector<2x32xf32>
    %113 = arith.addf %111, %112 : vector<2x32xf32>
    %114 = math.tanh %113 : vector<2x32xf32>
    %115 = arith.mulf %110, %114 : vector<2x32xf32>
    %116 = arith.index_cast %c3_i32 : i32 to index
    %c0_36 = arith.constant 0 : index
    %c0_37 = arith.constant 0 : index
    %117 = vector.load %arg5[%116, %c0_36, %c0_37] : memref<8x2x32xf32, #tpu.memory_space<vmem>>, vector<1x2x32xf32>
    %118 = vector.shape_cast %117 : vector<1x2x32xf32> to vector<2x32xf32>
    %119 = vector.shape_cast %115 : vector<2x32xf32> to vector<1x2x32xf32>
    tpu.vector_store %arg5[%116, %c0_36, %c0_37], %119 {strides = array<i32>} : memref<8x2x32xf32, #tpu.memory_space<vmem>>, vector<1x2x32xf32>,
    %c4_i32 = arith.constant 4 : i32
    %120 = arith.index_cast %c4_i32 : i32 to index
    %c0_38 = arith.constant 0 : index
    %c0_39 = arith.constant 0 : index
    %121 = vector.load %arg1[%120, %c0_38, %c0_39] : memref<8x2x16xf32, #tpu.memory_space<vmem>>, vector<1x2x16xf32>
    %122 = vector.shape_cast %121 : vector<1x2x16xf32> to vector<2x16xf32>
    %cst_40 = arith.constant dense<0.000000e+00> : vector<2x128xf32>
    %123 = tpu.matmul %122, %3, %cst_40 {dimension_numbers = #tpu.dot_dimension_numbers<[1], [0], [0], [1], [0, 0, 1, 1], [], []>} : vector<2x16xf32>, vector<16x128xf32>, vector<2x128xf32> -> vector<2x128xf32>
    %cst_41 = arith.constant dense<0.000000e+00> : vector<2x128xf32>
    %124 = tpu.matmul %115, %4, %cst_41 {dimension_numbers = #tpu.dot_dimension_numbers<[1], [0], [0], [1], [0, 0, 1, 1], [], []>} : vector<2x32xf32>, vector<32x128xf32>, vector<2x128xf32> -> vector<2x128xf32>
    %125 = arith.addf %123, %124 : vector<2x128xf32>
    %126 = vector.broadcast %5 : vector<1x128xf32> to vector<2x128xf32>
    %127 = arith.addf %125, %126 : vector<2x128xf32>
    %128 = vector.extract_strided_slice %127 {offsets = [0, 0], sizes = [2, 96], strides = [1, 1]} : vector<2x128xf32> to vector<2x96xf32>
    %129 = arith.negf %128 : vector<2x96xf32>
    %130 = math.exp %129 : vector<2x96xf32>
    %cst_42 = arith.constant 1.000000e+00 : f32
    %131 = vector.broadcast %cst_42 : f32 to vector<2x96xf32>
    %132 = arith.addf %131, %130 : vector<2x96xf32>
    %133 = arith.divf %131, %132 : vector<2x96xf32>
    %134 = vector.extract_strided_slice %127 {offsets = [0, 96], sizes = [2, 32], strides = [1, 1]} : vector<2x128xf32> to vector<2x32xf32>
    %135 = math.tanh %134 : vector<2x32xf32>
    %136 = vector.extract_strided_slice %133 {offsets = [0, 0], sizes = [2, 32], strides = [1, 1]} : vector<2x96xf32> to vector<2x32xf32>
    %137 = vector.extract_strided_slice %133 {offsets = [0, 32], sizes = [2, 32], strides = [1, 1]} : vector<2x96xf32> to vector<2x32xf32>
    %138 = vector.extract_strided_slice %133 {offsets = [0, 64], sizes = [2, 32], strides = [1, 1]} : vector<2x96xf32> to vector<2x32xf32>
    %139 = arith.mulf %137, %113 : vector<2x32xf32>
    %140 = arith.mulf %136, %135 : vector<2x32xf32>
    %141 = arith.addf %139, %140 : vector<2x32xf32>
    %142 = math.tanh %141 : vector<2x32xf32>
    %143 = arith.mulf %138, %142 : vector<2x32xf32>
    %144 = arith.index_cast %c4_i32 : i32 to index
    %c0_43 = arith.constant 0 : index
    %c0_44 = arith.constant 0 : index
    %145 = vector.load %arg5[%144, %c0_43, %c0_44] : memref<8x2x32xf32, #tpu.memory_space<vmem>>, vector<1x2x32xf32>
    %146 = vector.shape_cast %145 : vector<1x2x32xf32> to vector<2x32xf32>
    %147 = vector.shape_cast %143 : vector<2x32xf32> to vector<1x2x32xf32>
    tpu.vector_store %arg5[%144, %c0_43, %c0_44], %147 {strides = array<i32>} : memref<8x2x32xf32, #tpu.memory_space<vmem>>, vector<1x2x32xf32>,
    %c5_i32 = arith.constant 5 : i32
    %148 = arith.index_cast %c5_i32 : i32 to index
    %c0_45 = arith.constant 0 : index
    %c0_46 = arith.constant 0 : index
    %149 = vector.load %arg1[%148, %c0_45, %c0_46] : memref<8x2x16xf32, #tpu.memory_space<vmem>>, vector<1x2x16xf32>
    %150 = vector.shape_cast %149 : vector<1x2x16xf32> to vector<2x16xf32>
    %cst_47 = arith.constant dense<0.000000e+00> : vector<2x128xf32>
    %151 = tpu.matmul %150, %3, %cst_47 {dimension_numbers = #tpu.dot_dimension_numbers<[1], [0], [0], [1], [0, 0, 1, 1], [], []>} : vector<2x16xf32>, vector<16x128xf32>, vector<2x128xf32> -> vector<2x128xf32>
    %cst_48 = arith.constant dense<0.000000e+00> : vector<2x128xf32>
    %152 = tpu.matmul %143, %4, %cst_48 {dimension_numbers = #tpu.dot_dimension_numbers<[1], [0], [0], [1], [0, 0, 1, 1], [], []>} : vector<2x32xf32>, vector<32x128xf32>, vector<2x128xf32> -> vector<2x128xf32>
    %153 = arith.addf %151, %152 : vector<2x128xf32>
    %154 = vector.broadcast %5 : vector<1x128xf32> to vector<2x128xf32>
    %155 = arith.addf %153, %154 : vector<2x128xf32>
    %156 = vector.extract_strided_slice %155 {offsets = [0, 0], sizes = [2, 96], strides = [1, 1]} : vector<2x128xf32> to vector<2x96xf32>
    %157 = arith.negf %156 : vector<2x96xf32>
    %158 = math.exp %157 : vector<2x96xf32>
    %cst_49 = arith.constant 1.000000e+00 : f32
    %159 = vector.broadcast %cst_49 : f32 to vector<2x96xf32>
    %160 = arith.addf %159, %158 : vector<2x96xf32>
    %161 = arith.divf %159, %160 : vector<2x96xf32>
    %162 = vector.extract_strided_slice %155 {offsets = [0, 96], sizes = [2, 32], strides = [1, 1]} : vector<2x128xf32> to vector<2x32xf32>
    %163 = math.tanh %162 : vector<2x32xf32>
    %164 = vector.extract_strided_slice %161 {offsets = [0, 0], sizes = [2, 32], strides = [1, 1]} : vector<2x96xf32> to vector<2x32xf32>
    %165 = vector.extract_strided_slice %161 {offsets = [0, 32], sizes = [2, 32], strides = [1, 1]} : vector<2x96xf32> to vector<2x32xf32>
    %166 = vector.extract_strided_slice %161 {offsets = [0, 64], sizes = [2, 32], strides = [1, 1]} : vector<2x96xf32> to vector<2x32xf32>
    %167 = arith.mulf %165, %141 : vector<2x32xf32>
    %168 = arith.mulf %164, %163 : vector<2x32xf32>
    %169 = arith.addf %167, %168 : vector<2x32xf32>
    %170 = math.tanh %169 : vector<2x32xf32>
    %171 = arith.mulf %166, %170 : vector<2x32xf32>
    %172 = arith.index_cast %c5_i32 : i32 to index
    %c0_50 = arith.constant 0 : index
    %c0_51 = arith.constant 0 : index
    %173 = vector.load %arg5[%172, %c0_50, %c0_51] : memref<8x2x32xf32, #tpu.memory_space<vmem>>, vector<1x2x32xf32>
    %174 = vector.shape_cast %173 : vector<1x2x32xf32> to vector<2x32xf32>
    %175 = vector.shape_cast %171 : vector<2x32xf32> to vector<1x2x32xf32>
    tpu.vector_store %arg5[%172, %c0_50, %c0_51], %175 {strides = array<i32>} : memref<8x2x32xf32, #tpu.memory_space<vmem>>, vector<1x2x32xf32>,
    %c6_i32 = arith.constant 6 : i32
    %176 = arith.index_cast %c6_i32 : i32 to index
    %c0_52 = arith.constant 0 : index
    %c0_53 = arith.constant 0 : index
    %177 = vector.load %arg1[%176, %c0_52, %c0_53] : memref<8x2x16xf32, #tpu.memory_space<vmem>>, vector<1x2x16xf32>
    %178 = vector.shape_cast %177 : vector<1x2x16xf32> to vector<2x16xf32>
    %cst_54 = arith.constant dense<0.000000e+00> : vector<2x128xf32>
    %179 = tpu.matmul %178, %3, %cst_54 {dimension_numbers = #tpu.dot_dimension_numbers<[1], [0], [0], [1], [0, 0, 1, 1], [], []>} : vector<2x16xf32>, vector<16x128xf32>, vector<2x128xf32> -> vector<2x128xf32>
    %cst_55 = arith.constant dense<0.000000e+00> : vector<2x128xf32>
    %180 = tpu.matmul %171, %4, %cst_55 {dimension_numbers = #tpu.dot_dimension_numbers<[1], [0], [0], [1], [0, 0, 1, 1], [], []>} : vector<2x32xf32>, vector<32x128xf32>, vector<2x128xf32> -> vector<2x128xf32>
    %181 = arith.addf %179, %180 : vector<2x128xf32>
    %182 = vector.broadcast %5 : vector<1x128xf32> to vector<2x128xf32>
    %183 = arith.addf %181, %182 : vector<2x128xf32>
    %184 = vector.extract_strided_slice %183 {offsets = [0, 0], sizes = [2, 96], strides = [1, 1]} : vector<2x128xf32> to vector<2x96xf32>
    %185 = arith.negf %184 : vector<2x96xf32>
    %186 = math.exp %185 : vector<2x96xf32>
    %cst_56 = arith.constant 1.000000e+00 : f32
    %187 = vector.broadcast %cst_56 : f32 to vector<2x96xf32>
    %188 = arith.addf %187, %186 : vector<2x96xf32>
    %189 = arith.divf %187, %188 : vector<2x96xf32>
    %190 = vector.extract_strided_slice %183 {offsets = [0, 96], sizes = [2, 32], strides = [1, 1]} : vector<2x128xf32> to vector<2x32xf32>
    %191 = math.tanh %190 : vector<2x32xf32>
    %192 = vector.extract_strided_slice %189 {offsets = [0, 0], sizes = [2, 32], strides = [1, 1]} : vector<2x96xf32> to vector<2x32xf32>
    %193 = vector.extract_strided_slice %189 {offsets = [0, 32], sizes = [2, 32], strides = [1, 1]} : vector<2x96xf32> to vector<2x32xf32>
    %194 = vector.extract_strided_slice %189 {offsets = [0, 64], sizes = [2, 32], strides = [1, 1]} : vector<2x96xf32> to vector<2x32xf32>
    %195 = arith.mulf %193, %169 : vector<2x32xf32>
    %196 = arith.mulf %192, %191 : vector<2x32xf32>
    %197 = arith.addf %195, %196 : vector<2x32xf32>
    %198 = math.tanh %197 : vector<2x32xf32>
    %199 = arith.mulf %194, %198 : vector<2x32xf32>
    %200 = arith.index_cast %c6_i32 : i32 to index
    %c0_57 = arith.constant 0 : index
    %c0_58 = arith.constant 0 : index
    %201 = vector.load %arg5[%200, %c0_57, %c0_58] : memref<8x2x32xf32, #tpu.memory_space<vmem>>, vector<1x2x32xf32>
    %202 = vector.shape_cast %201 : vector<1x2x32xf32> to vector<2x32xf32>
    %203 = vector.shape_cast %199 : vector<2x32xf32> to vector<1x2x32xf32>
    tpu.vector_store %arg5[%200, %c0_57, %c0_58], %203 {strides = array<i32>} : memref<8x2x32xf32, #tpu.memory_space<vmem>>, vector<1x2x32xf32>,
    %c7_i32 = arith.constant 7 : i32
    %204 = arith.index_cast %c7_i32 : i32 to index
    %c0_59 = arith.constant 0 : index
    %c0_60 = arith.constant 0 : index
    %205 = vector.load %arg1[%204, %c0_59, %c0_60] : memref<8x2x16xf32, #tpu.memory_space<vmem>>, vector<1x2x16xf32>
    %206 = vector.shape_cast %205 : vector<1x2x16xf32> to vector<2x16xf32>
    %cst_61 = arith.constant dense<0.000000e+00> : vector<2x128xf32>
    %207 = tpu.matmul %206, %3, %cst_61 {dimension_numbers = #tpu.dot_dimension_numbers<[1], [0], [0], [1], [0, 0, 1, 1], [], []>} : vector<2x16xf32>, vector<16x128xf32>, vector<2x128xf32> -> vector<2x128xf32>
    %cst_62 = arith.constant dense<0.000000e+00> : vector<2x128xf32>
    %208 = tpu.matmul %199, %4, %cst_62 {dimension_numbers = #tpu.dot_dimension_numbers<[1], [0], [0], [1], [0, 0, 1, 1], [], []>} : vector<2x32xf32>, vector<32x128xf32>, vector<2x128xf32> -> vector<2x128xf32>
    %209 = arith.addf %207, %208 : vector<2x128xf32>
    %210 = vector.broadcast %5 : vector<1x128xf32> to vector<2x128xf32>
    %211 = arith.addf %209, %210 : vector<2x128xf32>
    %212 = vector.extract_strided_slice %211 {offsets = [0, 0], sizes = [2, 96], strides = [1, 1]} : vector<2x128xf32> to vector<2x96xf32>
    %213 = arith.negf %212 : vector<2x96xf32>
    %214 = math.exp %213 : vector<2x96xf32>
    %cst_63 = arith.constant 1.000000e+00 : f32
    %215 = vector.broadcast %cst_63 : f32 to vector<2x96xf32>
    %216 = arith.addf %215, %214 : vector<2x96xf32>
    %217 = arith.divf %215, %216 : vector<2x96xf32>
    %218 = vector.extract_strided_slice %211 {offsets = [0, 96], sizes = [2, 32], strides = [1, 1]} : vector<2x128xf32> to vector<2x32xf32>
    %219 = math.tanh %218 : vector<2x32xf32>
    %220 = vector.extract_strided_slice %217 {offsets = [0, 0], sizes = [2, 32], strides = [1, 1]} : vector<2x96xf32> to vector<2x32xf32>
    %221 = vector.extract_strided_slice %217 {offsets = [0, 32], sizes = [2, 32], strides = [1, 1]} : vector<2x96xf32> to vector<2x32xf32>
    %222 = vector.extract_strided_slice %217 {offsets = [0, 64], sizes = [2, 32], strides = [1, 1]} : vector<2x96xf32> to vector<2x32xf32>
    %223 = arith.mulf %221, %197 : vector<2x32xf32>
    %224 = arith.mulf %220, %219 : vector<2x32xf32>
    %225 = arith.addf %223, %224 : vector<2x32xf32>
    %226 = math.tanh %225 : vector<2x32xf32>
    %227 = arith.mulf %222, %226 : vector<2x32xf32>
    %228 = arith.index_cast %c7_i32 : i32 to index
    %c0_64 = arith.constant 0 : index
    %c0_65 = arith.constant 0 : index
    %229 = vector.load %arg5[%228, %c0_64, %c0_65] : memref<8x2x32xf32, #tpu.memory_space<vmem>>, vector<1x2x32xf32>
    %230 = vector.shape_cast %229 : vector<1x2x32xf32> to vector<2x32xf32>
    %231 = vector.shape_cast %227 : vector<2x32xf32> to vector<1x2x32xf32>
    tpu.vector_store %arg5[%228, %c0_64, %c0_65], %231 {strides = array<i32>} : memref<8x2x32xf32, #tpu.memory_space<vmem>>, vector<1x2x32xf32>,
    %c8_i32 = arith.constant 8 : i32
    %c0_66 = arith.constant 0 : index
    %c0_67 = arith.constant 0 : index
    %232 = vector.load %arg6[%c0_66, %c0_67] : memref<2x32xf32, #tpu.memory_space<vmem>>, vector<2x32xf32>
    tpu.vector_store %arg6[%c0_66, %c0_67], %227 {strides = array<i32>} : memref<2x32xf32, #tpu.memory_space<vmem>>, vector<2x32xf32>,
    %c0_68 = arith.constant 0 : index
    %c0_69 = arith.constant 0 : index
    %233 = vector.load %arg7[%c0_68, %c0_69] : memref<2x32xf32, #tpu.memory_space<vmem>>, vector<2x32xf32>
    tpu.vector_store %arg7[%c0_68, %c0_69], %225 {strides = array<i32>} : memref<2x32xf32, #tpu.memory_space<vmem>>, vector<2x32xf32>,
    return
  }
  func.func @transform_0(%arg0: i32) -> (i32, i32, i32) {
    %c0_i32 = arith.constant 0 : i32
    %c0_i32_0 = arith.constant 0 : i32
    %c0_i32_1 = arith.constant 0 : i32
    return %arg0, %c0_i32, %c0_i32_0 : i32, i32, i32
  }
  func.func @transform_4(%arg0: i32) -> (i32, i32, i32) {
    %c0_i32 = arith.constant 0 : i32
    %c0_i32_0 = arith.constant 0 : i32
    %c0_i32_1 = arith.constant 0 : i32
    return %arg0, %c0_i32, %c0_i32_0 : i32, i32, i32
  }
}

</mosaic_0001>

<llo_original>
// kernel: tpu_custom_call.1
$region0: #{tpu_custom_call.1}
  #allocation0 [shape = 'u32[]', space=smem, size = 0x4, offset = 0x4, fixed_abs, tag = 'smem constant byte address 0x4 - core index']
  #allocation1 [shape = 'u32[144,128]{1,0:T(1,128)}', space=vmem, size = 0x12000, scoped, tag = 'internal scratch']
  #allocation2 [shape = 'f32[2,32]{1,0:T(2,128)}', space=vmem, size = 0x400, scoped, tag = 'scratch operand']
  #allocation3 [shape = 'f32[2,32]{1,0:T(2,128)}', space=vmem, size = 0x400, scoped, tag = 'scratch operand']
  #allocation4 [shape = 'f32[16,128]{1,0:T(8,128)}', space=vmem, size = 0x2000, scoped, tag = 'scratch operand']
  #allocation5 [shape = 'f32[32,128]{1,0:T(8,128)}', space=vmem, size = 0x4000, scoped, tag = 'scratch operand']
  #allocation6 [shape = 'f32[1,128]{1,0:T(1,128)}', space=vmem, size = 0x200, scoped, tag = 'scratch operand']
  #allocation7 [shape = 's32[3]{0}', space=sflag, size = 0xc, scoped, tag = 'scratch operand']
  #allocation12 [shape = 's32[]', space=sflag, size = 0x4, offset = 0, fixed_abs, tag = 'sflag constant byte address 0x0 - dummy sync flag']
  #allocation13 [shape = 's32[]', space=sflag, size = 0x4, offset = 0, fixed_abs, tag = 'sflag constant byte address 0x0 - dummy sync flag']
  #allocation14 [shape = 'u32[]', space=smem, size = 0x4, offset = 0x44, fixed_abs, tag = 'smem constant byte address 0x44 - assertion arg 0']
  #allocation15 [shape = 'u32[]', space=smem, size = 0x4, offset = 0x48, fixed_abs, tag = 'smem constant byte address 0x48 - assertion arg 1']
  #allocation16 [shape = 's32[]', space=sflag, size = 0x4, offset = 0, fixed_abs, tag = 'sflag constant byte address 0x0 - dummy sync flag']
  #allocation17 [shape = 's32[]', space=sflag, size = 0x4, offset = 0, fixed_abs, tag = 'sflag constant byte address 0x0 - dummy sync flag']
  #allocation18 [shape = 's32[]', space=sflag, size = 0x4, offset = 0, fixed_abs, tag = 'sflag constant byte address 0x0 - dummy sync flag']
  %s0 = inlined_call_operand.hbm [shape: f32[8,2,16], index: 0, kind: input, shape index: {}]
  %s1 = inlined_call_operand.hbm [shape: f32[16,128], index: 1, kind: input, shape index: {}]
  %s2 = inlined_call_operand.hbm [shape: f32[32,128], index: 2, kind: input, shape index: {}]
  %s3 = inlined_call_operand.vmem [shape: f32[1,128], index: 3, kind: input, shape index: {}]
  %s4 = inlined_call_operand.hbm [shape: f32[8,2,32], index: 4, kind: output, shape index: {}]
  %s5 = sld [smem:[#allocation0]]
  $region60: #{tpu_custom_call.1} parent=0
    _
  %s7 = ssub.s32 1, %s5
  %s8 = scalar_select 0, %s7, %s5
  $region1: #{tpu_custom_call.1} parent=0
    #allocation8 [shape = 'u8[8192]{0}', space=vmem, size = 0x2000, scoped, tag = 'input window, operand 0, single buffered']
    #allocation9 [shape = 's32[1]{0}', space=sflag, size = 0x4, scoped, tag = 'scoped memory for tpu_custom_call.1']
    #allocation10 [shape = 's32[1]{0}', space=sflag, size = 0x4, scoped, tag = 'scoped memory for tpu_custom_call.1']
    #allocation11 [shape = 'u8[8192]{0}', space=vmem, size = 0x2000, scoped, tag = 'output window, operand 0, single buffered']
    %9 = vsyncpa [#allocation9], 0
    %10 = vsyncpa [#allocation10], 0
    // Predicated region
    $region2: #{tpu_custom_call.1} parent=1 // pred_check
      _
    $region3: #{tpu_custom_call.1} parent=1 // pred_check_branch
      %12 = sbr.rel (0) target = $region5
    $region4: #{tpu_custom_call.1} parent=1 // pred_region
      %s14 = ssub.s32 256, 256
      %15 = vsyncadd [#allocation9], %s14
      %s16 = sshll.u32 [#allocation8], 4
      %s17 = int_to_ptr.vmem [resolvable:$true] %s16
      %22 = dma.hbm_to_vmem [thread:$0]  %s0, 256, %s17, [#allocation9], 32, 32, 2
    $region5: #{tpu_custom_call.1} parent=1 // pred_fallthru
      _
    // Predicated region
    $region6: #{tpu_custom_call.1} parent=1 // pred_check
      _
    $region7: #{tpu_custom_call.1} parent=1 // pred_check_branch
      %24 = sbr.rel (0) target = $region9
    $region8: #{tpu_custom_call.1} parent=1 // pred_region
      %25 = dma.done [#allocation9], 256
    $region9: #{tpu_custom_call.1} parent=1 // pred_fallthru
      _
    %p26 = scmp.eq.s32.totalorder 0, 0
    // Predicated region
    $region10: #{tpu_custom_call.1} parent=1 // pred_check
      %p27 = pneg %p26
    $region11: #{tpu_custom_call.1} parent=1 // pred_check_branch
      %29 = sbr.rel (%p27) target = $region13
    $region12: #{tpu_custom_call.1} parent=1 // pred_region
      // Predicated region
      $region14: #{tpu_custom_call.1} parent=12 // pred_check
        _
      $region15: #{tpu_custom_call.1} parent=12 // pred_check_branch
        %31 = sbr.rel target = $region17
      $region16: #{tpu_custom_call.1} parent=12 // pred_region
        %32 = sst [smem:[#allocation14]] [#allocation13]
        %33 = sst [smem:[#allocation15]] [#allocation12]
      $region17: #{tpu_custom_call.1} parent=12 // pred_fallthru
        _
      %35 = shalt.err (0)
      %s37 = sshll.u32 [#allocation4], 4
      %s38 = int_to_ptr.vmem [resolvable:$true] %s37
      %40 = dma.hbm_to_vmem [thread:$0]  %s1, 256, %s38, [#allocation7]
      %s41 = scalar_lea.sflag [#allocation7], 1
      // Predicated region
      $region18: #{tpu_custom_call.1} parent=12 // pred_check
        _
      $region19: #{tpu_custom_call.1} parent=12 // pred_check_branch
        %43 = sbr.rel target = $region21
      $region20: #{tpu_custom_call.1} parent=12 // pred_region
        %44 = sst [smem:[#allocation14]] [#allocation17]
        %45 = sst [smem:[#allocation15]] [#allocation16]
      $region21: #{tpu_custom_call.1} parent=12 // pred_fallthru
        _
      %47 = shalt.err (0)
      %s49 = sshll.u32 [#allocation5], 4
      %s50 = int_to_ptr.vmem [resolvable:$true] %s49
      %52 = dma.hbm_to_vmem [thread:$0]  %s2, 512, %s50, %s41
      %s53 = scalar_lea.sflag [#allocation7], 2
      %p55 = scmp.lt.u32.totalorder 1, 8
      %p56 = pneg %p55
      // Predicated region
      $region22: #{tpu_custom_call.1} parent=12 // pred_check
        _
      $region23: #{tpu_custom_call.1} parent=12 // pred_check_branch
        %58 = sbr.rel (%p55) target = $region25
      $region24: #{tpu_custom_call.1} parent=12 // pred_region
        %s73 = sand.u32 1, 7
        %p74 = scmp.eq.s32.totalorder %s73, 0
        %p75 = pneg %p74
        // Predicated region
        $region37: #{tpu_custom_call.1} parent=24 // pred_check
          _
        $region38: #{tpu_custom_call.1} parent=24 // pred_check_branch
          %77 = sbr.rel (%p74) target = $region40
        $region39: #{tpu_custom_call.1} parent=24 // pred_region
          %s78 = sand.u32 1, 7
          %s79 = ssub.s32 1, %s78
          %s80 = scalar_lea.vmem %s3, %s79
          %s81 = ssub.s32 1, %s78
          %s82 = scalar_lea.vmem [#allocation6], %s81
          %s83 = sshllo.u32 0, %s78
          loop: start=0, step=1, limit=1
          $region41: #{tpu_custom_call.1} parent=39 // loop_pre_header
            _
          $region42: #{tpu_custom_call.1} parent=39 // loop_header
            %s85 = sphi 0, %s89
            %p86 = scmp.ge.s32.totalorder %s85, 1
            %s90 = sphi %s80, %s80
            %s91 = sphi %s82, %s82
          $region43: #{tpu_custom_call.1} parent=39 // loop_header_branch
            %88 = sbr.rel (%p86) target = $region47
          $region44: #{tpu_custom_call.1} parent=39 // loop_body
            %v92 = vld [vmem:[%s90] sm:%s83]
            %93 = vst [vmem:[%s91] sm:%s83] %v92
          $region45: #{tpu_custom_call.1} parent=39 // loop_footer
            %s89 = sadd.s32 1, %s85
          $region46: #{tpu_custom_call.1} parent=39 // loop_footer_branch
            %84 = sbr.rel target = $region42
          $region47: #{tpu_custom_call.1} parent=39 // loop_exit
            _
        $region40: #{tpu_custom_call.1} parent=24 // pred_fallthru
          _
      $region25: #{tpu_custom_call.1} parent=12 // pred_fallthru
        _
      // Predicated region
      $region26: #{tpu_custom_call.1} parent=12 // pred_check
        %p59 = pneg %p55
      $region27: #{tpu_custom_call.1} parent=12 // pred_check_branch
        %61 = sbr.rel (%p59) target = $region29
      $region28: #{tpu_custom_call.1} parent=12 // pred_region
        %s62 = sshllo.u32 0, 1
        loop: start=0, step=1, limit=1
        $region30: #{tpu_custom_call.1} parent=28 // loop_pre_header
          _
        $region31: #{tpu_custom_call.1} parent=28 // loop_header
          %s64 = sphi 0, %s68
          %p65 = scmp.ge.s32.totalorder %s64, 1
          %s69 = sphi %s3, %s3
          %s70 = sphi [#allocation6], [#allocation6]
        $region32: #{tpu_custom_call.1} parent=28 // loop_header_branch
          %67 = sbr.rel (%p65) target = $region36
        $region33: #{tpu_custom_call.1} parent=28 // loop_body
          %v71 = vld [vmem:[%s69] sm:%s62]
          %72 = vst [vmem:[%s70] sm:%s62] %v71
        $region34: #{tpu_custom_call.1} parent=28 // loop_footer
          %s68 = sadd.s32 1, %s64
        $region35: #{tpu_custom_call.1} parent=28 // loop_footer_branch
          %63 = sbr.rel target = $region31
        $region36: #{tpu_custom_call.1} parent=28 // loop_exit
          _
      $region29: #{tpu_custom_call.1} parent=12 // pred_fallthru
        _
      // Predicated region
      $region48: #{tpu_custom_call.1} parent=12 // pred_check
        _
      $region49: #{tpu_custom_call.1} parent=12 // pred_check_branch
        %96 = sbr.rel (0) target = $region51
      $region50: #{tpu_custom_call.1} parent=12 // pred_region
        %97 = vsyncadd %s53, 16
      $region51: #{tpu_custom_call.1} parent=12 // pred_fallthru
        _
      %s98 = smul.u32 16, 1
      %s99 = sshll.u32 %s98, 4
      %100 = dma.done [#allocation7], %s99
      %s101 = smul.u32 32, 1
      %s102 = sshll.u32 %s101, 4
      %103 = dma.done %s41, %s102
      %s104 = smul.u32 1, 1
      %s105 = sshll.u32 %s104, 4
      %106 = dma.done %s53, %s105
      %vm107 = vcmask 254976
      %108 = vst.msk [vmem:[#allocation2] sm:$0x3] %vm107, 0.0
      %109 = vst.msk [vmem:[#allocation3] sm:$0x3] %vm107, 0.0
    $region13: #{tpu_custom_call.1} parent=1 // pred_fallthru
      _
    %v110 = vld [vmem:[#allocation4] sm:$0xff]
    %v111 = vld [vmem:[#allocation4 + $0x8] sm:$0xff]
    %v112 = vld [vmem:[#allocation5] sm:$0xff]
    %v113 = vld [vmem:[#allocation5 + $0x8] sm:$0xff]
    %v114 = vld [vmem:[#allocation5 + $0x10] sm:$0xff]
    %v115 = vld [vmem:[#allocation5 + $0x18] sm:$0xff]
    %v116 = vld [vmem:[#allocation6] sm:$0x1]
    %v117 = vld [vmem:[#allocation2] sm:$0x3]
    %v118 = vld [vmem:[#allocation3] sm:$0x3]
    %v119 = vld [vmem:[#allocation8] sm:$0x3]
    %vm120 = vcmask 261120
    %v122 = vsel %vm120, %v117, 0
    %124 = vmatprep.subr.mxu0 0.0
    %125 = vmatpush1.msra.mxu0 %v112
    %126 = vmatprep.subr.mxu0 0.0
    %127 = vmatpush1.msra.mxu0 %v113
    %128 = vmatprep.subr.mxu0 0.0
    %129 = vmatpush1.msra.mxu0 %v114
    %130 = vmatprep.subr.mxu0 0.0
    %131 = vmatpush1.msra.mxu0 %v115
    %132 = vmatprep.subr.mxu0 0.0
    %133 = vmatpush1.msra.mxu0 0.0
    %134 = vmatprep.subr.mxu0 0.0
    %135 = vmatpush1.msra.mxu0 0.0
    %136 = vmatprep.subr.mxu0 0.0
    %137 = vmatpush1.msra.mxu0 0.0
    %138 = vmatprep.subr.mxu0 0.0
    %139 = vmatpush1.msra.mxu0 0.0
    %140 = vmatprep.subr.mxu0 0.0
    %141 = vmatpush1.msra.mxu0 0.0
    %142 = vmatprep.subr.mxu0 0.0
    %143 = vmatpush1.msra.mxu0 0.0
    %144 = vmatprep.subr.mxu0 0.0
    %145 = vmatpush1.msra.mxu0 0.0
    %146 = vmatprep.subr.mxu0 0.0
    %147 = vmatpush1.msra.mxu0 0.0
    %148 = vmatprep.subr.mxu0 0.0
    %149 = vmatpush1.msra.mxu0 0.0
    %150 = vmatprep.subr.mxu0 0.0
    %151 = vmatpush1.msra.mxu0 0.0
    %152 = vmatprep.subr.mxu0 0.0
    %153 = vmatpush1.msra.mxu0 0.0
    %154 = vmatprep.subr.mxu0 0.0
    %155 = vmatpush1.msra.mxu0 0.0
    %156 = vmatprep.subr.mxu0 0.0
    %157 = vmatpush1.msra.mxu0 0.0
    %158 = vmatprep.subr.mxu0 0.0
    %159 = vmatpush1.msra.mxu0 0.0
    %160 = vmatprep.subr.mxu0 0.0
    %161 = vmatpush1.msra.mxu0 0.0
    %162 = vmatprep.subr.mxu0 0.0
    %163 = vmatpush1.msra.mxu0 0.0
    %164 = vmatprep.subr.mxu0 0.0
    %165 = vmatpush1.msra.mxu0 0.0
    %166 = vmatprep.subr.mxu0 0.0
    %167 = vmatpush1.msra.mxu0 0.0
    %168 = vmatprep.subr.mxu0 0.0
    %169 = vmatpush1.msra.mxu0 0.0
    %170 = vmatprep.subr.mxu0 0.0
    %171 = vmatpush1.msra.mxu0 0.0
    %172 = vmatprep.subr.mxu0 0.0
    %173 = vmatpush1.msra.mxu0 0.0
    %174 = vmatprep.subr.mxu0 0.0
    %175 = vmatpush1.msra.mxu0 0.0
    %176 = vmatprep.subr.mxu0 0.0
    %177 = vmatpush1.msra.mxu0 0.0
    %178 = vmatprep.subr.mxu0 0.0
    %179 = vmatpush1.msra.mxu0 0.0
    %180 = vmatprep.subr.mxu0 0.0
    %181 = vmatpush1.msra.mxu0 0.0
    %182 = vmatprep.subr.mxu0 0.0
    %183 = vmatpush1.msra.mxu0 0.0
    %184 = vmatprep.subr.mxu0 0.0
    %185 = vmatpush1.msra.mxu0 0.0
    %186 = vmatprep.subr.mxu0 0.0
    %187 = vmatpush1.msra.mxu0 0.0
    %188 = vmatprep.mubr.f32.mxu0 0.0
    %189 = vmatmul.mubr.f32.gmra.mrb[0].mxu0 %v122
    %v190 = vpop.f32.mrb[0].mxu0
    %v191 = vadd.f32 0.0, %v190
    %v192 = vpop.f32.mrb[0].mxu0
    %193 = vdwg.mxu0
    %vm194 = vcmask 130048
    %v196 = vsel %vm194, %v119, 0
    %198 = vmatprep.subr.mxu0 0.0
    %199 = vmatpush1.msra.mxu0 %v110
    %200 = vmatprep.subr.mxu0 0.0
    %201 = vmatpush1.msra.mxu0 %v111
    %202 = vmatprep.subr.mxu0 0.0
    %203 = vmatpush1.msra.mxu0 0.0
    %204 = vmatprep.subr.mxu0 0.0
    %205 = vmatpush1.msra.mxu0 0.0
    %206 = vmatprep.subr.mxu0 0.0
    %207 = vmatpush1.msra.mxu0 0.0
    %208 = vmatprep.subr.mxu0 0.0
    %209 = vmatpush1.msra.mxu0 0.0
    %210 = vmatprep.subr.mxu0 0.0
    %211 = vmatpush1.msra.mxu0 0.0
    %212 = vmatprep.subr.mxu0 0.0
    %213 = vmatpush1.msra.mxu0 0.0
    %214 = vmatprep.subr.mxu0 0.0
    %215 = vmatpush1.msra.mxu0 0.0
    %216 = vmatprep.subr.mxu0 0.0
    %217 = vmatpush1.msra.mxu0 0.0
    %218 = vmatprep.subr.mxu0 0.0
    %219 = vmatpush1.msra.mxu0 0.0
    %220 = vmatprep.subr.mxu0 0.0
    %221 = vmatpush1.msra.mxu0 0.0
    %222 = vmatprep.subr.mxu0 0.0
    %223 = vmatpush1.msra.mxu0 0.0
    %224 = vmatprep.subr.mxu0 0.0
    %225 = vmatpush1.msra.mxu0 0.0
    %226 = vmatprep.subr.mxu0 0.0
    %227 = vmatpush1.msra.mxu0 0.0
    %228 = vmatprep.subr.mxu0 0.0
    %229 = vmatpush1.msra.mxu0 0.0
    %230 = vmatprep.subr.mxu0 0.0
    %231 = vmatpush1.msra.mxu0 0.0
    %232 = vmatprep.subr.mxu0 0.0
    %233 = vmatpush1.msra.mxu0 0.0
    %234 = vmatprep.subr.mxu0 0.0
    %235 = vmatpush1.msra.mxu0 0.0
    %236 = vmatprep.subr.mxu0 0.0
    %237 = vmatpush1.msra.mxu0 0.0
    %238 = vmatprep.subr.mxu0 0.0
    %239 = vmatpush1.msra.mxu0 0.0
    %240 = vmatprep.subr.mxu0 0.0
    %241 = vmatpush1.msra.mxu0 0.0
    %242 = vmatprep.subr.mxu0 0.0
    %243 = vmatpush1.msra.mxu0 0.0
    %244 = vmatprep.subr.mxu0 0.0
    %245 = vmatpush1.msra.mxu0 0.0
    %246 = vmatprep.subr.mxu0 0.0
    %247 = vmatpush1.msra.mxu0 0.0
    %248 = vmatprep.subr.mxu0 0.0
    %249 = vmatpush1.msra.mxu0 0.0
    %250 = vmatprep.subr.mxu0 0.0
    %251 = vmatpush1.msra.mxu0 0.0
    %252 = vmatprep.subr.mxu0 0.0
    %253 = vmatpush1.msra.mxu0 0.0
    %254 = vmatprep.subr.mxu0 0.0
    %255 = vmatpush1.msra.mxu0 0.0
    %256 = vmatprep.subr.mxu0 0.0
    %257 = vmatpush1.msra.mxu0 0.0
    %258 = vmatprep.subr.mxu0 0.0
    %259 = vmatpush1.msra.mxu0 0.0
    %260 = vmatprep.subr.mxu0 0.0
    %261 = vmatpush1.msra.mxu0 0.0
    %262 = vmatprep.mubr.f32.mxu0 0.0
    %263 = vmatmul.mubr.f32.gmra.mrb[0].mxu0 %v196
    %v264 = vpop.f32.mrb[0].mxu0
    %v265 = vadd.f32 %v191, %v264
    %v266 = vpop.f32.mrb[0].mxu0
    %267 = vdwg.mxu0
    %v269 = vlaneseq
    %v270 = vshrl.u32 %v269, 7
    %v271 = vsub.s32 0, %v270
    %v272 = vrot.slane %v116, %v271
    %v274 = vadd.f32 %v265, %v272
    %v275 = vxor.u32 %v274, 2147483648
    %v276 = vmul.f32 %v275, 1.442695
    %v277 = vpow.pop %v276
    %v278 = vadd.f32 %v277, 1.0
    %v279 = vrcp.pop %v278
    %v280 = vmul.f32 1.0, %v279
    %v281 = vtanh.pop %v274
    %283 = vrot.lane.b32.xlu0 %v118, 32
    %v284 = vpop.permute.xlu0 %283
    %v286 = vmul.f32 %v280, %v284
    %288 = vrot.lane.b32.xlu0 %v281, 32
    %v289 = vpop.permute.xlu0 %288
    %v291 = vmul.f32 %v280, %v289
    %293 = vrot.lane.b32.xlu0 %v291, 32
    %v294 = vpop.permute.xlu0 %293
    %v296 = vadd.f32 %v286, %v294
    %v297 = vtanh.pop %v296
    %299 = vrot.lane.b32.xlu0 %v297, 32
    %v300 = vpop.permute.xlu0 %299
    %v302 = vmul.f32 %v280, %v300
    %304 = vrot.lane.b32.xlu0 %v302, 64
    %v305 = vpop.permute.xlu0 %304
    %vm307 = vcmask 254976
    %308 = vst.msk [vmem:[#allocation11] sm:$0x3] %vm307, %v305
    %s309 = scalar_lea.vmem [#allocation8], 2
    %v310 = vld [vmem:[%s309] sm:$0x3]
    %v311 = vsel %vm120, %v305, 0
    %313 = vmatprep.subr.mxu0 0.0
    %314 = vmatpush1.msra.mxu0 %v112
    %315 = vmatprep.subr.mxu0 0.0
    %316 = vmatpush1.msra.mxu0 %v113
    %317 = vmatprep.subr.mxu0 0.0
    %318 = vmatpush1.msra.mxu0 %v114
    %319 = vmatprep.subr.mxu0 0.0
    %320 = vmatpush1.msra.mxu0 %v115
    %321 = vmatprep.subr.mxu0 0.0
    %322 = vmatpush1.msra.mxu0 0.0
    %323 = vmatprep.subr.mxu0 0.0
    %324 = vmatpush1.msra.mxu0 0.0
    %325 = vmatprep.subr.mxu0 0.0
    %326 = vmatpush1.msra.mxu0 0.0
    %327 = vmatprep.subr.mxu0 0.0
    %328 = vmatpush1.msra.mxu0 0.0
    %329 = vmatprep.subr.mxu0 0.0
    %330 = vmatpush1.msra.mxu0 0.0
    %331 = vmatprep.subr.mxu0 0.0
    %332 = vmatpush1.msra.mxu0 0.0
    %333 = vmatprep.subr.mxu0 0.0
    %334 = vmatpush1.msra.mxu0 0.0
    %335 = vmatprep.subr.mxu0 0.0
    %336 = vmatpush1.msra.mxu0 0.0
    %337 = vmatprep.subr.mxu0 0.0
    %338 = vmatpush1.msra.mxu0 0.0
    %339 = vmatprep.subr.mxu0 0.0
    %340 = vmatpush1.msra.mxu0 0.0
    %341 = vmatprep.subr.mxu0 0.0
    %342 = vmatpush1.msra.mxu0 0.0
    %343 = vmatprep.subr.mxu0 0.0
    %344 = vmatpush1.msra.mxu0 0.0
    %345 = vmatprep.subr.mxu0 0.0
    %346 = vmatpush1.msra.mxu0 0.0
    %347 = vmatprep.subr.mxu0 0.0
    %348 = vmatpush1.msra.mxu0 0.0
    %349 = vmatprep.subr.mxu0 0.0
    %350 = vmatpush1.msra.mxu0 0.0
    %351 = vmatprep.subr.mxu0 0.0
    %352 = vmatpush1.msra.mxu0 0.0
    %353 = vmatprep.subr.mxu0 0.0
    %354 = vmatpush1.msra.mxu0 0.0
    %355 = vmatprep.subr.mxu0 0.0
    %356 = vmatpush1.msra.mxu0 0.0
    %357 = vmatprep.subr.mxu0 0.0
    %358 = vmatpush1.msra.mxu0 0.0
    %359 = vmatprep.subr.mxu0 0.0
    %360 = vmatpush1.msra.mxu0 0.0
    %361 = vmatprep.subr.mxu0 0.0
    %362 = vmatpush1.msra.mxu0 0.0
    %363 = vmatprep.subr.mxu0 0.0
    %364 = vmatpush1.msra.mxu0 0.0
    %365 = vmatprep.subr.mxu0 0.0
    %366 = vmatpush1.msra.mxu0 0.0
    %367 = vmatprep.subr.mxu0 0.0
    %368 = vmatpush1.msra.mxu0 0.0
    %369 = vmatprep.subr.mxu0 0.0
    %370 = vmatpush1.msra.mxu0 0.0
    %371 = vmatprep.subr.mxu0 0.0
    %372 = vmatpush1.msra.mxu0 0.0
    %373 = vmatprep.subr.mxu0 0.0
    %374 = vmatpush1.msra.mxu0 0.0
    %375 = vmatprep.subr.mxu0 0.0
    %376 = vmatpush1.msra.mxu0 0.0
    %377 = vmatprep.mubr.f32.mxu0 0.0
    %378 = vmatmul.mubr.f32.gmra.mrb[0].mxu0 %v311
    %v379 = vpop.f32.mrb[0].mxu0
    %v380 = vadd.f32 0.0, %v379
    %v381 = vpop.f32.mrb[0].mxu0
    %382 = vdwg.mxu0
    %v384 = vsel %vm194, %v310, 0
    %386 = vmatprep.subr.mxu0 0.0
    %387 = vmatpush1.msra.mxu0 %v110
    %388 = vmatprep.subr.mxu0 0.0
    %389 = vmatpush1.msra.mxu0 %v111
    %390 = vmatprep.subr.mxu0 0.0
    %391 = vmatpush1.msra.mxu0 0.0
    %392 = vmatprep.subr.mxu0 0.0
    %393 = vmatpush1.msra.mxu0 0.0
    %394 = vmatprep.subr.mxu0 0.0
    %395 = vmatpush1.msra.mxu0 0.0
    %396 = vmatprep.subr.mxu0 0.0
    %397 = vmatpush1.msra.mxu0 0.0
    %398 = vmatprep.subr.mxu0 0.0
    %399 = vmatpush1.msra.mxu0 0.0
    %400 = vmatprep.subr.mxu0 0.0
    %401 = vmatpush1.msra.mxu0 0.0
    %402 = vmatprep.subr.mxu0 0.0
    %403 = vmatpush1.msra.mxu0 0.0
    %404 = vmatprep.subr.mxu0 0.0
    %405 = vmatpush1.msra.mxu0 0.0
    %406 = vmatprep.subr.mxu0 0.0
    %407 = vmatpush1.msra.mxu0 0.0
    %408 = vmatprep.subr.mxu0 0.0
    %409 = vmatpush1.msra.mxu0 0.0
    %410 = vmatprep.subr.mxu0 0.0
    %411 = vmatpush1.msra.mxu0 0.0
    %412 = vmatprep.subr.mxu0 0.0
    %413 = vmatpush1.msra.mxu0 0.0
    %414 = vmatprep.subr.mxu0 0.0
    %415 = vmatpush1.msra.mxu0 0.0
    %416 = vmatprep.subr.mxu0 0.0
    %417 = vmatpush1.msra.mxu0 0.0
    %418 = vmatprep.subr.mxu0 0.0
    %419 = vmatpush1.msra.mxu0 0.0
    %420 = vmatprep.subr.mxu0 0.0
    %421 = vmatpush1.msra.mxu0 0.0
    %422 = vmatprep.subr.mxu0 0.0
    %423 = vmatpush1.msra.mxu0 0.0
    %424 = vmatprep.subr.mxu0 0.0
    %425 = vmatpush1.msra.mxu0 0.0
    %426 = vmatprep.subr.mxu0 0.0
    %427 = vmatpush1.msra.mxu0 0.0
    %428 = vmatprep.subr.mxu0 0.0
    %429 = vmatpush1.msra.mxu0 0.0
    %430 = vmatprep.subr.mxu0 0.0
    %431 = vmatpush1.msra.mxu0 0.0
    %432 = vmatprep.subr.mxu0 0.0
    %433 = vmatpush1.msra.mxu0 0.0
    %434 = vmatprep.subr.mxu0 0.0
    %435 = vmatpush1.msra.mxu0 0.0
    %436 = vmatprep.subr.mxu0 0.0
    %437 = vmatpush1.msra.mxu0 0.0
    %438 = vmatprep.subr.mxu0 0.0
    %439 = vmatpush1.msra.mxu0 0.0
    %440 = vmatprep.subr.mxu0 0.0
    %441 = vmatpush1.msra.mxu0 0.0
    %442 = vmatprep.subr.mxu0 0.0
    %443 = vmatpush1.msra.mxu0 0.0
    %444 = vmatprep.subr.mxu0 0.0
    %445 = vmatpush1.msra.mxu0 0.0
    %446 = vmatprep.subr.mxu0 0.0
    %447 = vmatpush1.msra.mxu0 0.0
    %448 = vmatprep.subr.mxu0 0.0
    %449 = vmatpush1.msra.mxu0 0.0
    %450 = vmatprep.mubr.f32.mxu0 0.0
    %451 = vmatmul.mubr.f32.gmra.mrb[0].mxu0 %v384
    %v452 = vpop.f32.mrb[0].mxu0
    %v453 = vadd.f32 %v380, %v452
    %v454 = vpop.f32.mrb[0].mxu0
    %455 = vdwg.mxu0
    %v456 = vadd.f32 %v453, %v272
    %v457 = vxor.u32 %v456, 2147483648
    %v458 = vmul.f32 %v457, 1.442695
    %v459 = vpow.pop %v458
    %v460 = vadd.f32 %v459, 1.0
    %v461 = vrcp.pop %v460
    %v462 = vmul.f32 1.0, %v461
    %v463 = vtanh.pop %v456
    %v464 = vmul.f32 %v462, %v296
    %466 = vrot.lane.b32.xlu0 %v463, 32
    %v467 = vpop.permute.xlu0 %466
    %v469 = vmul.f32 %v462, %v467
    %471 = vrot.lane.b32.xlu0 %v469, 32
    %v472 = vpop.permute.xlu0 %471
    %v474 = vadd.f32 %v464, %v472
    %v475 = vtanh.pop %v474
    %477 = vrot.lane.b32.xlu0 %v475, 32
    %v478 = vpop.permute.xlu0 %477
    %v480 = vmul.f32 %v462, %v478
    %482 = vrot.lane.b32.xlu0 %v480, 64
    %v483 = vpop.permute.xlu0 %482
    %s485 = scalar_lea.vmem [#allocation11], 2
    %486 = vst.msk [vmem:[%s485] sm:$0x3] %vm307, %v483
    %s487 = scalar_lea.vmem [#allocation8], 4
    %v488 = vld [vmem:[%s487] sm:$0x3]
    %v489 = vsel %vm120, %v483, 0
    %491 = vmatprep.subr.mxu0 0.0
    %492 = vmatpush1.msra.mxu0 %v112
    %493 = vmatprep.subr.mxu0 0.0
    %494 = vmatpush1.msra.mxu0 %v113
    %495 = vmatprep.subr.mxu0 0.0
    %496 = vmatpush1.msra.mxu0 %v114
    %497 = vmatprep.subr.mxu0 0.0
    %498 = vmatpush1.msra.mxu0 %v115
    %499 = vmatprep.subr.mxu0 0.0
    %500 = vmatpush1.msra.mxu0 0.0
    %501 = vmatprep.subr.mxu0 0.0
    %502 = vmatpush1.msra.mxu0 0.0
    %503 = vmatprep.subr.mxu0 0.0
    %504 = vmatpush1.msra.mxu0 0.0
    %505 = vmatprep.subr.mxu0 0.0
    %506 = vmatpush1.msra.mxu0 0.0
    %507 = vmatprep.subr.mxu0 0.0
    %508 = vmatpush1.msra.mxu0 0.0
    %509 = vmatprep.subr.mxu0 0.0
    %510 = vmatpush1.msra.mxu0 0.0
    %511 = vmatprep.subr.mxu0 0.0
    %512 = vmatpush1.msra.mxu0 0.0
    %513 = vmatprep.subr.mxu0 0.0
    %514 = vmatpush1.msra.mxu0 0.0
    %515 = vmatprep.subr.mxu0 0.0
    %516 = vmatpush1.msra.mxu0 0.0
    %517 = vmatprep.subr.mxu0 0.0
    %518 = vmatpush1.msra.mxu0 0.0
    %519 = vmatprep.subr.mxu0 0.0
    %520 = vmatpush1.msra.mxu0 0.0
    %521 = vmatprep.subr.mxu0 0.0
    %522 = vmatpush1.msra.mxu0 0.0
    %523 = vmatprep.subr.mxu0 0.0
    %524 = vmatpush1.msra.mxu0 0.0
    %525 = vmatprep.subr.mxu0 0.0
    %526 = vmatpush1.msra.mxu0 0.0
    %527 = vmatprep.subr.mxu0 0.0
    %528 = vmatpush1.msra.mxu0 0.0
    %529 = vmatprep.subr.mxu0 0.0
    %530 = vmatpush1.msra.mxu0 0.0
    %531 = vmatprep.subr.mxu0 0.0
    %532 = vmatpush1.msra.mxu0 0.0
    %533 = vmatprep.subr.mxu0 0.0
    %534 = vmatpush1.msra.mxu0 0.0
    %535 = vmatprep.subr.mxu0 0.0
    %536 = vmatpush1.msra.mxu0 0.0
    %537 = vmatprep.subr.mxu0 0.0
    %538 = vmatpush1.msra.mxu0 0.0
    %539 = vmatprep.subr.mxu0 0.0
    %540 = vmatpush1.msra.mxu0 0.0
    %541 = vmatprep.subr.mxu0 0.0
    %542 = vmatpush1.msra.mxu0 0.0
    %543 = vmatprep.subr.mxu0 0.0
    %544 = vmatpush1.msra.mxu0 0.0
    %545 = vmatprep.subr.mxu0 0.0
    %546 = vmatpush1.msra.mxu0 0.0
    %547 = vmatprep.subr.mxu0 0.0
    %548 = vmatpush1.msra.mxu0 0.0
    %549 = vmatprep.subr.mxu0 0.0
    %550 = vmatpush1.msra.mxu0 0.0
    %551 = vmatprep.subr.mxu0 0.0
    %552 = vmatpush1.msra.mxu0 0.0
    %553 = vmatprep.subr.mxu0 0.0
    %554 = vmatpush1.msra.mxu0 0.0
    %555 = vmatprep.mubr.f32.mxu0 0.0
    %556 = vmatmul.mubr.f32.gmra.mrb[0].mxu0 %v489
    %v557 = vpop.f32.mrb[0].mxu0
    %v558 = vadd.f32 0.0, %v557
    %v559 = vpop.f32.mrb[0].mxu0
    %560 = vdwg.mxu0
    %v562 = vsel %vm194, %v488, 0
    %564 = vmatprep.subr.mxu0 0.0
    %565 = vmatpush1.msra.mxu0 %v110
    %566 = vmatprep.subr.mxu0 0.0
    %567 = vmatpush1.msra.mxu0 %v111
    %568 = vmatprep.subr.mxu0 0.0
    %569 = vmatpush1.msra.mxu0 0.0
    %570 = vmatprep.subr.mxu0 0.0
    %571 = vmatpush1.msra.mxu0 0.0
    %572 = vmatprep.subr.mxu0 0.0
    %573 = vmatpush1.msra.mxu0 0.0
    %574 = vmatprep.subr.mxu0 0.0
    %575 = vmatpush1.msra.mxu0 0.0
    %576 = vmatprep.subr.mxu0 0.0
    %577 = vmatpush1.msra.mxu0 0.0
    %578 = vmatprep.subr.mxu0 0.0
    %579 = vmatpush1.msra.mxu0 0.0
    %580 = vmatprep.subr.mxu0 0.0
    %581 = vmatpush1.msra.mxu0 0.0
    %582 = vmatprep.subr.mxu0 0.0
    %583 = vmatpush1.msra.mxu0 0.0
    %584 = vmatprep.subr.mxu0 0.0
    %585 = vmatpush1.msra.mxu0 0.0
    %586 = vmatprep.subr.mxu0 0.0
    %587 = vmatpush1.msra.mxu0 0.0
    %588 = vmatprep.subr.mxu0 0.0
    %589 = vmatpush1.msra.mxu0 0.0
    %590 = vmatprep.subr.mxu0 0.0
    %591 = vmatpush1.msra.mxu0 0.0
    %592 = vmatprep.subr.mxu0 0.0
    %593 = vmatpush1.msra.mxu0 0.0
    %594 = vmatprep.subr.mxu0 0.0
    %595 = vmatpush1.msra.mxu0 0.0
    %596 = vmatprep.subr.mxu0 0.0
    %597 = vmatpush1.msra.mxu0 0.0
    %598 = vmatprep.subr.mxu0 0.0
    %599 = vmatpush1.msra.mxu0 0.0
    %600 = vmatprep.subr.mxu0 0.0
    %601 = vmatpush1.msra.mxu0 0.0
    %602 = vmatprep.subr.mxu0 0.0
    %603 = vmatpush1.msra.mxu0 0.0
    %604 = vmatprep.subr.mxu0 0.0
    %605 = vmatpush1.msra.mxu0 0.0
    %606 = vmatprep.subr.mxu0 0.0
    %607 = vmatpush1.msra.mxu0 0.0
    %608 = vmatprep.subr.mxu0 0.0
    %609 = vmatpush1.msra.mxu0 0.0
    %610 = vmatprep.subr.mxu0 0.0
    %611 = vmatpush1.msra.mxu0 0.0
    %612 = vmatprep.subr.mxu0 0.0
    %613 = vmatpush1.msra.mxu0 0.0
    %614 = vmatprep.subr.mxu0 0.0
    %615 = vmatpush1.msra.mxu0 0.0
    %616 = vmatprep.subr.mxu0 0.0
    %617 = vmatpush1.msra.mxu0 0.0
    %618 = vmatprep.subr.mxu0 0.0
    %619 = vmatpush1.msra.mxu0 0.0
    %620 = vmatprep.subr.mxu0 0.0
    %621 = vmatpush1.msra.mxu0 0.0
    %622 = vmatprep.subr.mxu0 0.0
    %623 = vmatpush1.msra.mxu0 0.0
    %624 = vmatprep.subr.mxu0 0.0
    %625 = vmatpush1.msra.mxu0 0.0
    %626 = vmatprep.subr.mxu0 0.0
    %627 = vmatpush1.msra.mxu0 0.0
    %628 = vmatprep.mubr.f32.mxu0 0.0
    %629 = vmatmul.mubr.f32.gmra.mrb[0].mxu0 %v562
    %v630 = vpop.f32.mrb[0].mxu0
    %v631 = vadd.f32 %v558, %v630
    %v632 = vpop.f32.mrb[0].mxu0
    %633 = vdwg.mxu0
    %v634 = vadd.f32 %v631, %v272
    %v635 = vxor.u32 %v634, 2147483648
    %v636 = vmul.f32 %v635, 1.442695
    %v637 = vpow.pop %v636
    %v638 = vadd.f32 %v637, 1.0
    %v639 = vrcp.pop %v638
    %v640 = vmul.f32 1.0, %v639
    %v641 = vtanh.pop %v634
    %v642 = vmul.f32 %v640, %v474
    %644 = vrot.lane.b32.xlu0 %v641, 32
    %v645 = vpop.permute.xlu0 %644
    %v647 = vmul.f32 %v640, %v645
    %649 = vrot.lane.b32.xlu0 %v647, 32
    %v650 = vpop.permute.xlu0 %649
    %v652 = vadd.f32 %v642, %v650
    %v653 = vtanh.pop %v652
    %655 = vrot.lane.b32.xlu0 %v653, 32
    %v656 = vpop.permute.xlu0 %655
    %v658 = vmul.f32 %v640, %v656
    %660 = vrot.lane.b32.xlu0 %v658, 64
    %v661 = vpop.permute.xlu0 %660
    %s663 = scalar_lea.vmem [#allocation11], 4
    %664 = vst.msk [vmem:[%s663] sm:$0x3] %vm307, %v661
    %s665 = scalar_lea.vmem [#allocation8], 6
    %v666 = vld [vmem:[%s665] sm:$0x3]
    %v667 = vsel %vm120, %v661, 0
    %669 = vmatprep.subr.mxu0 0.0
    %670 = vmatpush1.msra.mxu0 %v112
    %671 = vmatprep.subr.mxu0 0.0
    %672 = vmatpush1.msra.mxu0 %v113
    %673 = vmatprep.subr.mxu0 0.0
    %674 = vmatpush1.msra.mxu0 %v114
    %675 = vmatprep.subr.mxu0 0.0
    %676 = vmatpush1.msra.mxu0 %v115
    %677 = vmatprep.subr.mxu0 0.0
    %678 = vmatpush1.msra.mxu0 0.0
    %679 = vmatprep.subr.mxu0 0.0
    %680 = vmatpush1.msra.mxu0 0.0
    %681 = vmatprep.subr.mxu0 0.0
    %682 = vmatpush1.msra.mxu0 0.0
    %683 = vmatprep.subr.mxu0 0.0
    %684 = vmatpush1.msra.mxu0 0.0
    %685 = vmatprep.subr.mxu0 0.0
    %686 = vmatpush1.msra.mxu0 0.0
    %687 = vmatprep.subr.mxu0 0.0
    %688 = vmatpush1.msra.mxu0 0.0
    %689 = vmatprep.subr.mxu0 0.0
    %690 = vmatpush1.msra.mxu0 0.0
    %691 = vmatprep.subr.mxu0 0.0
    %692 = vmatpush1.msra.mxu0 0.0
    %693 = vmatprep.subr.mxu0 0.0
    %694 = vmatpush1.msra.mxu0 0.0
    %695 = vmatprep.subr.mxu0 0.0
    %696 = vmatpush1.msra.mxu0 0.0
    %697 = vmatprep.subr.mxu0 0.0
    %698 = vmatpush1.msra.mxu0 0.0
    %699 = vmatprep.subr.mxu0 0.0
    %700 = vmatpush1.msra.mxu0 0.0
    %701 = vmatprep.subr.mxu0 0.0
    %702 = vmatpush1.msra.mxu0 0.0
    %703 = vmatprep.subr.mxu0 0.0
    %704 = vmatpush1.msra.mxu0 0.0
    %705 = vmatprep.subr.mxu0 0.0
    %706 = vmatpush1.msra.mxu0 0.0
    %707 = vmatprep.subr.mxu0 0.0
    %708 = vmatpush1.msra.mxu0 0.0
    %709 = vmatprep.subr.mxu0 0.0
    %710 = vmatpush1.msra.mxu0 0.0
    %711 = vmatprep.subr.mxu0 0.0
    %712 = vmatpush1.msra.mxu0 0.0
    %713 = vmatprep.subr.mxu0 0.0
    %714 = vmatpush1.msra.mxu0 0.0
    %715 = vmatprep.subr.mxu0 0.0
    %716 = vmatpush1.msra.mxu0 0.0
    %717 = vmatprep.subr.mxu0 0.0
    %718 = vmatpush1.msra.mxu0 0.0
    %719 = vmatprep.subr.mxu0 0.0
    %720 = vmatpush1.msra.mxu0 0.0
    %721 = vmatprep.subr.mxu0 0.0
    %722 = vmatpush1.msra.mxu0 0.0
    %723 = vmatprep.subr.mxu0 0.0
    %724 = vmatpush1.msra.mxu0 0.0
    %725 = vmatprep.subr.mxu0 0.0
    %726 = vmatpush1.msra.mxu0 0.0
    %727 = vmatprep.subr.mxu0 0.0
    %728 = vmatpush1.msra.mxu0 0.0
    %729 = vmatprep.subr.mxu0 0.0
    %730 = vmatpush1.msra.mxu0 0.0
    %731 = vmatprep.subr.mxu0 0.0
    %732 = vmatpush1.msra.mxu0 0.0
    %733 = vmatprep.mubr.f32.mxu0 0.0
    %734 = vmatmul.mubr.f32.gmra.mrb[0].mxu0 %v667
    %v735 = vpop.f32.mrb[0].mxu0
    %v736 = vadd.f32 0.0, %v735
    %v737 = vpop.f32.mrb[0].mxu0
    %738 = vdwg.mxu0
    %v740 = vsel %vm194, %v666, 0
    %742 = vmatprep.subr.mxu0 0.0
    %743 = vmatpush1.msra.mxu0 %v110
    %744 = vmatprep.subr.mxu0 0.0
    %745 = vmatpush1.msra.mxu0 %v111
    %746 = vmatprep.subr.mxu0 0.0
    %747 = vmatpush1.msra.mxu0 0.0
    %748 = vmatprep.subr.mxu0 0.0
    %749 = vmatpush1.msra.mxu0 0.0
    %750 = vmatprep.subr.mxu0 0.0
    %751 = vmatpush1.msra.mxu0 0.0
    %752 = vmatprep.subr.mxu0 0.0
    %753 = vmatpush1.msra.mxu0 0.0
    %754 = vmatprep.subr.mxu0 0.0
    %755 = vmatpush1.msra.mxu0 0.0
    %756 = vmatprep.subr.mxu0 0.0
    %757 = vmatpush1.msra.mxu0 0.0
    %758 = vmatprep.subr.mxu0 0.0
    %759 = vmatpush1.msra.mxu0 0.0
    %760 = vmatprep.subr.mxu0 0.0
    %761 = vmatpush1.msra.mxu0 0.0
    %762 = vmatprep.subr.mxu0 0.0
    %763 = vmatpush1.msra.mxu0 0.0
    %764 = vmatprep.subr.mxu0 0.0
    %765 = vmatpush1.msra.mxu0 0.0
    %766 = vmatprep.subr.mxu0 0.0
    %767 = vmatpush1.msra.mxu0 0.0
    %768 = vmatprep.subr.mxu0 0.0
    %769 = vmatpush1.msra.mxu0 0.0
    %770 = vmatprep.subr.mxu0 0.0
    %771 = vmatpush1.msra.mxu0 0.0
    %772 = vmatprep.subr.mxu0 0.0
    %773 = vmatpush1.msra.mxu0 0.0
    %774 = vmatprep.subr.mxu0 0.0
    %775 = vmatpush1.msra.mxu0 0.0
    %776 = vmatprep.subr.mxu0 0.0
    %777 = vmatpush1.msra.mxu0 0.0
    %778 = vmatprep.subr.mxu0 0.0
    %779 = vmatpush1.msra.mxu0 0.0
    %780 = vmatprep.subr.mxu0 0.0
    %781 = vmatpush1.msra.mxu0 0.0
    %782 = vmatprep.subr.mxu0 0.0
    %783 = vmatpush1.msra.mxu0 0.0
    %784 = vmatprep.subr.mxu0 0.0
    %785 = vmatpush1.msra.mxu0 0.0
    %786 = vmatprep.subr.mxu0 0.0
    %787 = vmatpush1.msra.mxu0 0.0
    %788 = vmatprep.subr.mxu0 0.0
    %789 = vmatpush1.msra.mxu0 0.0
    %790 = vmatprep.subr.mxu0 0.0
    %791 = vmatpush1.msra.mxu0 0.0
    %792 = vmatprep.subr.mxu0 0.0
    %793 = vmatpush1.msra.mxu0 0.0
    %794 = vmatprep.subr.mxu0 0.0
    %795 = vmatpush1.msra.mxu0 0.0
    %796 = vmatprep.subr.mxu0 0.0
    %797 = vmatpush1.msra.mxu0 0.0
    %798 = vmatprep.subr.mxu0 0.0
    %799 = vmatpush1.msra.mxu0 0.0
    %800 = vmatprep.subr.mxu0 0.0
    %801 = vmatpush1.msra.mxu0 0.0
    %802 = vmatprep.subr.mxu0 0.0
    %803 = vmatpush1.msra.mxu0 0.0
    %804 = vmatprep.subr.mxu0 0.0
    %805 = vmatpush1.msra.mxu0 0.0
    %806 = vmatprep.mubr.f32.mxu0 0.0
    %807 = vmatmul.mubr.f32.gmra.mrb[0].mxu0 %v740
    %v808 = vpop.f32.mrb[0].mxu0
    %v809 = vadd.f32 %v736, %v808
    %v810 = vpop.f32.mrb[0].mxu0
    %811 = vdwg.mxu0
    %v812 = vadd.f32 %v809, %v272
    %v813 = vxor.u32 %v812, 2147483648
    %v814 = vmul.f32 %v813, 1.442695
    %v815 = vpow.pop %v814
    %v816 = vadd.f32 %v815, 1.0
    %v817 = vrcp.pop %v816
    %v818 = vmul.f32 1.0, %v817
    %v819 = vtanh.pop %v812
    %v820 = vmul.f32 %v818, %v652
    %822 = vrot.lane.b32.xlu0 %v819, 32
    %v823 = vpop.permute.xlu0 %822
    %v825 = vmul.f32 %v818, %v823
    %827 = vrot.lane.b32.xlu0 %v825, 32
    %v828 = vpop.permute.xlu0 %827
    %v830 = vadd.f32 %v820, %v828
    %v831 = vtanh.pop %v830
    %833 = vrot.lane.b32.xlu0 %v831, 32
    %v834 = vpop.permute.xlu0 %833
    %v836 = vmul.f32 %v818, %v834
    %838 = vrot.lane.b32.xlu0 %v836, 64
    %v839 = vpop.permute.xlu0 %838
    %s841 = scalar_lea.vmem [#allocation11], 6
    %842 = vst.msk [vmem:[%s841] sm:$0x3] %vm307, %v839
    %s843 = scalar_lea.vmem [#allocation8], 8
    %v844 = vld [vmem:[%s843] sm:$0x3]
    %v845 = vsel %vm120, %v839, 0
    %847 = vmatprep.subr.mxu0 0.0
    %848 = vmatpush1.msra.mxu0 %v112
    %849 = vmatprep.subr.mxu0 0.0
    %850 = vmatpush1.msra.mxu0 %v113
    %851 = vmatprep.subr.mxu0 0.0
    %852 = vmatpush1.msra.mxu0 %v114
    %853 = vmatprep.subr.mxu0 0.0
    %854 = vmatpush1.msra.mxu0 %v115
    %855 = vmatprep.subr.mxu0 0.0
    %856 = vmatpush1.msra.mxu0 0.0
    %857 = vmatprep.subr.mxu0 0.0
    %858 = vmatpush1.msra.mxu0 0.0
    %859 = vmatprep.subr.mxu0 0.0
    %860 = vmatpush1.msra.mxu0 0.0
    %861 = vmatprep.subr.mxu0 0.0
    %862 = vmatpush1.msra.mxu0 0.0
    %863 = vmatprep.subr.mxu0 0.0
    %864 = vmatpush1.msra.mxu0 0.0
    %865 = vmatprep.subr.mxu0 0.0
    %866 = vmatpush1.msra.mxu0 0.0
    %867 = vmatprep.subr.mxu0 0.0
    %868 = vmatpush1.msra.mxu0 0.0
    %869 = vmatprep.subr.mxu0 0.0
    %870 = vmatpush1.msra.mxu0 0.0
    %871 = vmatprep.subr.mxu0 0.0
    %872 = vmatpush1.msra.mxu0 0.0
    %873 = vmatprep.subr.mxu0 0.0
    %874 = vmatpush1.msra.mxu0 0.0
    %875 = vmatprep.subr.mxu0 0.0
    %876 = vmatpush1.msra.mxu0 0.0
    %877 = vmatprep.subr.mxu0 0.0
    %878 = vmatpush1.msra.mxu0 0.0
    %879 = vmatprep.subr.mxu0 0.0
    %880 = vmatpush1.msra.mxu0 0.0
    %881 = vmatprep.subr.mxu0 0.0
    %882 = vmatpush1.msra.mxu0 0.0
    %883 = vmatprep.subr.mxu0 0.0
    %884 = vmatpush1.msra.mxu0 0.0
    %885 = vmatprep.subr.mxu0 0.0
    %886 = vmatpush1.msra.mxu0 0.0
    %887 = vmatprep.subr.mxu0 0.0
    %888 = vmatpush1.msra.mxu0 0.0
    %889 = vmatprep.subr.mxu0 0.0
    %890 = vmatpush1.msra.mxu0 0.0
    %891 = vmatprep.subr.mxu0 0.0
    %892 = vmatpush1.msra.mxu0 0.0
    %893 = vmatprep.subr.mxu0 0.0
    %894 = vmatpush1.msra.mxu0 0.0
    %895 = vmatprep.subr.mxu0 0.0
    %896 = vmatpush1.msra.mxu0 0.0
    %897 = vmatprep.subr.mxu0 0.0
    %898 = vmatpush1.msra.mxu0 0.0
    %899 = vmatprep.subr.mxu0 0.0
    %900 = vmatpush1.msra.mxu0 0.0
    %901 = vmatprep.subr.mxu0 0.0
    %902 = vmatpush1.msra.mxu0 0.0
    %903 = vmatprep.subr.mxu0 0.0
    %904 = vmatpush1.msra.mxu0 0.0
    %905 = vmatprep.subr.mxu0 0.0
    %906 = vmatpush1.msra.mxu0 0.0
    %907 = vmatprep.subr.mxu0 0.0
    %908 = vmatpush1.msra.mxu0 0.0
    %909 = vmatprep.subr.mxu0 0.0
    %910 = vmatpush1.msra.mxu0 0.0
    %911 = vmatprep.mubr.f32.mxu0 0.0
    %912 = vmatmul.mubr.f32.gmra.mrb[0].mxu0 %v845
    %v913 = vpop.f32.mrb[0].mxu0
    %v914 = vadd.f32 0.0, %v913
    %v915 = vpop.f32.mrb[0].mxu0
    %916 = vdwg.mxu0
    %v918 = vsel %vm194, %v844, 0
    %920 = vmatprep.subr.mxu0 0.0
    %921 = vmatpush1.msra.mxu0 %v110
    %922 = vmatprep.subr.mxu0 0.0
    %923 = vmatpush1.msra.mxu0 %v111
    %924 = vmatprep.subr.mxu0 0.0
    %925 = vmatpush1.msra.mxu0 0.0
    %926 = vmatprep.subr.mxu0 0.0
    %927 = vmatpush1.msra.mxu0 0.0
    %928 = vmatprep.subr.mxu0 0.0
    %929 = vmatpush1.msra.mxu0 0.0
    %930 = vmatprep.subr.mxu0 0.0
    %931 = vmatpush1.msra.mxu0 0.0
    %932 = vmatprep.subr.mxu0 0.0
    %933 = vmatpush1.msra.mxu0 0.0
    %934 = vmatprep.subr.mxu0 0.0
    %935 = vmatpush1.msra.mxu0 0.0
    %936 = vmatprep.subr.mxu0 0.0
    %937 = vmatpush1.msra.mxu0 0.0
    %938 = vmatprep.subr.mxu0 0.0
    %939 = vmatpush1.msra.mxu0 0.0
    %940 = vmatprep.subr.mxu0 0.0
    %941 = vmatpush1.msra.mxu0 0.0
    %942 = vmatprep.subr.mxu0 0.0
    %943 = vmatpush1.msra.mxu0 0.0
    %944 = vmatprep.subr.mxu0 0.0
    %945 = vmatpush1.msra.mxu0 0.0
    %946 = vmatprep.subr.mxu0 0.0
    %947 = vmatpush1.msra.mxu0 0.0
    %948 = vmatprep.subr.mxu0 0.0
    %949 = vmatpush1.msra.mxu0 0.0
    %950 = vmatprep.subr.mxu0 0.0
    %951 = vmatpush1.msra.mxu0 0.0
    %952 = vmatprep.subr.mxu0 0.0
    %953 = vmatpush1.msra.mxu0 0.0
    %954 = vmatprep.subr.mxu0 0.0
    %955 = vmatpush1.msra.mxu0 0.0
    %956 = vmatprep.subr.mxu0 0.0
    %957 = vmatpush1.msra.mxu0 0.0
    %958 = vmatprep.subr.mxu0 0.0
    %959 = vmatpush1.msra.mxu0 0.0
    %960 = vmatprep.subr.mxu0 0.0
    %961 = vmatpush1.msra.mxu0 0.0
    %962 = vmatprep.subr.mxu0 0.0
    %963 = vmatpush1.msra.mxu0 0.0
    %964 = vmatprep.subr.mxu0 0.0
    %965 = vmatpush1.msra.mxu0 0.0
    %966 = vmatprep.subr.mxu0 0.0
    %967 = vmatpush1.msra.mxu0 0.0
    %968 = vmatprep.subr.mxu0 0.0
    %969 = vmatpush1.msra.mxu0 0.0
    %970 = vmatprep.subr.mxu0 0.0
    %971 = vmatpush1.msra.mxu0 0.0
    %972 = vmatprep.subr.mxu0 0.0
    %973 = vmatpush1.msra.mxu0 0.0
    %974 = vmatprep.subr.mxu0 0.0
    %975 = vmatpush1.msra.mxu0 0.0
    %976 = vmatprep.subr.mxu0 0.0
    %977 = vmatpush1.msra.mxu0 0.0
    %978 = vmatprep.subr.mxu0 0.0
    %979 = vmatpush1.msra.mxu0 0.0
    %980 = vmatprep.subr.mxu0 0.0
    %981 = vmatpush1.msra.mxu0 0.0
    %982 = vmatprep.subr.mxu0 0.0
    %983 = vmatpush1.msra.mxu0 0.0
    %984 = vmatprep.mubr.f32.mxu0 0.0
    %985 = vmatmul.mubr.f32.gmra.mrb[0].mxu0 %v918
    %v986 = vpop.f32.mrb[0].mxu0
    %v987 = vadd.f32 %v914, %v986
    %v988 = vpop.f32.mrb[0].mxu0
    %989 = vdwg.mxu0
    %v990 = vadd.f32 %v987, %v272
    %v991 = vxor.u32 %v990, 2147483648
    %v992 = vmul.f32 %v991, 1.442695
    %v993 = vpow.pop %v992
    %v994 = vadd.f32 %v993, 1.0
    %v995 = vrcp.pop %v994
    %v996 = vmul.f32 1.0, %v995
    %v997 = vtanh.pop %v990
    %v998 = vmul.f32 %v996, %v830
    %1000 = vrot.lane.b32.xlu0 %v997, 32
    %v1001 = vpop.permute.xlu0 %1000
    %v1003 = vmul.f32 %v996, %v1001
    %1005 = vrot.lane.b32.xlu0 %v1003, 32
    %v1006 = vpop.permute.xlu0 %1005
    %v1008 = vadd.f32 %v998, %v1006
    %v1009 = vtanh.pop %v1008
    %1011 = vrot.lane.b32.xlu0 %v1009, 32
    %v1012 = vpop.permute.xlu0 %1011
    %v1014 = vmul.f32 %v996, %v1012
    %1016 = vrot.lane.b32.xlu0 %v1014, 64
    %v1017 = vpop.permute.xlu0 %1016
    %s1019 = scalar_lea.vmem [#allocation11], 8
    %1020 = vst.msk [vmem:[%s1019] sm:$0x3] %vm307, %v1017
    %s1021 = scalar_lea.vmem [#allocation8], 10
    %v1022 = vld [vmem:[%s1021] sm:$0x3]
    %v1023 = vsel %vm120, %v1017, 0
    %1025 = vmatprep.subr.mxu0 0.0
    %1026 = vmatpush1.msra.mxu0 %v112
    %1027 = vmatprep.subr.mxu0 0.0
    %1028 = vmatpush1.msra.mxu0 %v113
    %1029 = vmatprep.subr.mxu0 0.0
    %1030 = vmatpush1.msra.mxu0 %v114
    %1031 = vmatprep.subr.mxu0 0.0
    %1032 = vmatpush1.msra.mxu0 %v115
    %1033 = vmatprep.subr.mxu0 0.0
    %1034 = vmatpush1.msra.mxu0 0.0
    %1035 = vmatprep.subr.mxu0 0.0
    %1036 = vmatpush1.msra.mxu0 0.0
    %1037 = vmatprep.subr.mxu0 0.0
    %1038 = vmatpush1.msra.mxu0 0.0
    %1039 = vmatprep.subr.mxu0 0.0
    %1040 = vmatpush1.msra.mxu0 0.0
    %1041 = vmatprep.subr.mxu0 0.0
    %1042 = vmatpush1.msra.mxu0 0.0
    %1043 = vmatprep.subr.mxu0 0.0
    %1044 = vmatpush1.msra.mxu0 0.0
    %1045 = vmatprep.subr.mxu0 0.0
    %1046 = vmatpush1.msra.mxu0 0.0
    %1047 = vmatprep.subr.mxu0 0.0
    %1048 = vmatpush1.msra.mxu0 0.0
    %1049 = vmatprep.subr.mxu0 0.0
    %1050 = vmatpush1.msra.mxu0 0.0
    %1051 = vmatprep.subr.mxu0 0.0
    %1052 = vmatpush1.msra.mxu0 0.0
    %1053 = vmatprep.subr.mxu0 0.0
    %1054 = vmatpush1.msra.mxu0 0.0
    %1055 = vmatprep.subr.mxu0 0.0
    %1056 = vmatpush1.msra.mxu0 0.0
    %1057 = vmatprep.subr.mxu0 0.0
    %1058 = vmatpush1.msra.mxu0 0.0
    %1059 = vmatprep.subr.mxu0 0.0
    %1060 = vmatpush1.msra.mxu0 0.0
    %1061 = vmatprep.subr.mxu0 0.0
    %1062 = vmatpush1.msra.mxu0 0.0
    %1063 = vmatprep.subr.mxu0 0.0
    %1064 = vmatpush1.msra.mxu0 0.0
    %1065 = vmatprep.subr.mxu0 0.0
    %1066 = vmatpush1.msra.mxu0 0.0
    %1067 = vmatprep.subr.mxu0 0.0
    %1068 = vmatpush1.msra.mxu0 0.0
    %1069 = vmatprep.subr.mxu0 0.0
    %1070 = vmatpush1.msra.mxu0 0.0
    %1071 = vmatprep.subr.mxu0 0.0
    %1072 = vmatpush1.msra.mxu0 0.0
    %1073 = vmatprep.subr.mxu0 0.0
    %1074 = vmatpush1.msra.mxu0 0.0
    %1075 = vmatprep.subr.mxu0 0.0
    %1076 = vmatpush1.msra.mxu0 0.0
    %1077 = vmatprep.subr.mxu0 0.0
    %1078 = vmatpush1.msra.mxu0 0.0
    %1079 = vmatprep.subr.mxu0 0.0
    %1080 = vmatpush1.msra.mxu0 0.0
    %1081 = vmatprep.subr.mxu0 0.0
    %1082 = vmatpush1.msra.mxu0 0.0
    %1083 = vmatprep.subr.mxu0 0.0
    %1084 = vmatpush1.msra.mxu0 0.0
    %1085 = vmatprep.subr.mxu0 0.0
    %1086 = vmatpush1.msra.mxu0 0.0
    %1087 = vmatprep.subr.mxu0 0.0
    %1088 = vmatpush1.msra.mxu0 0.0
    %1089 = vmatprep.mubr.f32.mxu0 0.0
    %1090 = vmatmul.mubr.f32.gmra.mrb[0].mxu0 %v1023
    %v1091 = vpop.f32.mrb[0].mxu0
    %v1092 = vadd.f32 0.0, %v1091
    %v1093 = vpop.f32.mrb[0].mxu0
    %1094 = vdwg.mxu0
    %v1096 = vsel %vm194, %v1022, 0
    %1098 = vmatprep.subr.mxu0 0.0
    %1099 = vmatpush1.msra.mxu0 %v110
    %1100 = vmatprep.subr.mxu0 0.0
    %1101 = vmatpush1.msra.mxu0 %v111
    %1102 = vmatprep.subr.mxu0 0.0
    %1103 = vmatpush1.msra.mxu0 0.0
    %1104 = vmatprep.subr.mxu0 0.0
    %1105 = vmatpush1.msra.mxu0 0.0
    %1106 = vmatprep.subr.mxu0 0.0
    %1107 = vmatpush1.msra.mxu0 0.0
    %1108 = vmatprep.subr.mxu0 0.0
    %1109 = vmatpush1.msra.mxu0 0.0
    %1110 = vmatprep.subr.mxu0 0.0
    %1111 = vmatpush1.msra.mxu0 0.0
    %1112 = vmatprep.subr.mxu0 0.0
    %1113 = vmatpush1.msra.mxu0 0.0
    %1114 = vmatprep.subr.mxu0 0.0
    %1115 = vmatpush1.msra.mxu0 0.0
    %1116 = vmatprep.subr.mxu0 0.0
    %1117 = vmatpush1.msra.mxu0 0.0
    %1118 = vmatprep.subr.mxu0 0.0
    %1119 = vmatpush1.msra.mxu0 0.0
    %1120 = vmatprep.subr.mxu0 0.0
    %1121 = vmatpush1.msra.mxu0 0.0
    %1122 = vmatprep.subr.mxu0 0.0
    %1123 = vmatpush1.msra.mxu0 0.0
    %1124 = vmatprep.subr.mxu0 0.0
    %1125 = vmatpush1.msra.mxu0 0.0
    %1126 = vmatprep.subr.mxu0 0.0
    %1127 = vmatpush1.msra.mxu0 0.0
    %1128 = vmatprep.subr.mxu0 0.0
    %1129 = vmatpush1.msra.mxu0 0.0
    %1130 = vmatprep.subr.mxu0 0.0
    %1131 = vmatpush1.msra.mxu0 0.0
    %1132 = vmatprep.subr.mxu0 0.0
    %1133 = vmatpush1.msra.mxu0 0.0
    %1134 = vmatprep.subr.mxu0 0.0
    %1135 = vmatpush1.msra.mxu0 0.0
    %1136 = vmatprep.subr.mxu0 0.0
    %1137 = vmatpush1.msra.mxu0 0.0
    %1138 = vmatprep.subr.mxu0 0.0
    %1139 = vmatpush1.msra.mxu0 0.0
    %1140 = vmatprep.subr.mxu0 0.0
    %1141 = vmatpush1.msra.mxu0 0.0
    %1142 = vmatprep.subr.mxu0 0.0
    %1143 = vmatpush1.msra.mxu0 0.0
    %1144 = vmatprep.subr.mxu0 0.0
    %1145 = vmatpush1.msra.mxu0 0.0
    %1146 = vmatprep.subr.mxu0 0.0
    %1147 = vmatpush1.msra.mxu0 0.0
    %1148 = vmatprep.subr.mxu0 0.0
    %1149 = vmatpush1.msra.mxu0 0.0
    %1150 = vmatprep.subr.mxu0 0.0
    %1151 = vmatpush1.msra.mxu0 0.0
    %1152 = vmatprep.subr.mxu0 0.0
    %1153 = vmatpush1.msra.mxu0 0.0
    %1154 = vmatprep.subr.mxu0 0.0
    %1155 = vmatpush1.msra.mxu0 0.0
    %1156 = vmatprep.subr.mxu0 0.0
    %1157 = vmatpush1.msra.mxu0 0.0
    %1158 = vmatprep.subr.mxu0 0.0
    %1159 = vmatpush1.msra.mxu0 0.0
    %1160 = vmatprep.subr.mxu0 0.0
    %1161 = vmatpush1.msra.mxu0 0.0
    %1162 = vmatprep.mubr.f32.mxu0 0.0
    %1163 = vmatmul.mubr.f32.gmra.mrb[0].mxu0 %v1096
    %v1164 = vpop.f32.mrb[0].mxu0
    %v1165 = vadd.f32 %v1092, %v1164
    %v1166 = vpop.f32.mrb[0].mxu0
    %1167 = vdwg.mxu0
    %v1168 = vadd.f32 %v1165, %v272
    %v1169 = vxor.u32 %v1168, 2147483648
    %v1170 = vmul.f32 %v1169, 1.442695
    %v1171 = vpow.pop %v1170
    %v1172 = vadd.f32 %v1171, 1.0
    %v1173 = vrcp.pop %v1172
    %v1174 = vmul.f32 1.0, %v1173
    %v1175 = vtanh.pop %v1168
    %v1176 = vmul.f32 %v1174, %v1008
    %1178 = vrot.lane.b32.xlu0 %v1175, 32
    %v1179 = vpop.permute.xlu0 %1178
    %v1181 = vmul.f32 %v1174, %v1179
    %1183 = vrot.lane.b32.xlu0 %v1181, 32
    %v1184 = vpop.permute.xlu0 %1183
    %v1186 = vadd.f32 %v1176, %v1184
    %v1187 = vtanh.pop %v1186
    %1189 = vrot.lane.b32.xlu0 %v1187, 32
    %v1190 = vpop.permute.xlu0 %1189
    %v1192 = vmul.f32 %v1174, %v1190
    %1194 = vrot.lane.b32.xlu0 %v1192, 64
    %v1195 = vpop.permute.xlu0 %1194
    %s1197 = scalar_lea.vmem [#allocation11], 10
    %1198 = vst.msk [vmem:[%s1197] sm:$0x3] %vm307, %v1195
    %s1199 = scalar_lea.vmem [#allocation8], 12
    %v1200 = vld [vmem:[%s1199] sm:$0x3]
    %v1201 = vsel %vm120, %v1195, 0
    %1203 = vmatprep.subr.mxu0 0.0
    %1204 = vmatpush1.msra.mxu0 %v112
    %1205 = vmatprep.subr.mxu0 0.0
    %1206 = vmatpush1.msra.mxu0 %v113
    %1207 = vmatprep.subr.mxu0 0.0
    %1208 = vmatpush1.msra.mxu0 %v114
    %1209 = vmatprep.subr.mxu0 0.0
    %1210 = vmatpush1.msra.mxu0 %v115
    %1211 = vmatprep.subr.mxu0 0.0
    %1212 = vmatpush1.msra.mxu0 0.0
    %1213 = vmatprep.subr.mxu0 0.0
    %1214 = vmatpush1.msra.mxu0 0.0
    %1215 = vmatprep.subr.mxu0 0.0
    %1216 = vmatpush1.msra.mxu0 0.0
    %1217 = vmatprep.subr.mxu0 0.0
    %1218 = vmatpush1.msra.mxu0 0.0
    %1219 = vmatprep.subr.mxu0 0.0
    %1220 = vmatpush1.msra.mxu0 0.0
    %1221 = vmatprep.subr.mxu0 0.0
    %1222 = vmatpush1.msra.mxu0 0.0
    %1223 = vmatprep.subr.mxu0 0.0
    %1224 = vmatpush1.msra.mxu0 0.0
    %1225 = vmatprep.subr.mxu0 0.0
    %1226 = vmatpush1.msra.mxu0 0.0
    %1227 = vmatprep.subr.mxu0 0.0
    %1228 = vmatpush1.msra.mxu0 0.0
    %1229 = vmatprep.subr.mxu0 0.0
    %1230 = vmatpush1.msra.mxu0 0.0
    %1231 = vmatprep.subr.mxu0 0.0
    %1232 = vmatpush1.msra.mxu0 0.0
    %1233 = vmatprep.subr.mxu0 0.0
    %1234 = vmatpush1.msra.mxu0 0.0
    %1235 = vmatprep.subr.mxu0 0.0
    %1236 = vmatpush1.msra.mxu0 0.0
    %1237 = vmatprep.subr.mxu0 0.0
    %1238 = vmatpush1.msra.mxu0 0.0
    %1239 = vmatprep.subr.mxu0 0.0
    %1240 = vmatpush1.msra.mxu0 0.0
    %1241 = vmatprep.subr.mxu0 0.0
    %1242 = vmatpush1.msra.mxu0 0.0
    %1243 = vmatprep.subr.mxu0 0.0
    %1244 = vmatpush1.msra.mxu0 0.0
    %1245 = vmatprep.subr.mxu0 0.0
    %1246 = vmatpush1.msra.mxu0 0.0
    %1247 = vmatprep.subr.mxu0 0.0
    %1248 = vmatpush1.msra.mxu0 0.0
    %1249 = vmatprep.subr.mxu0 0.0
    %1250 = vmatpush1.msra.mxu0 0.0
    %1251 = vmatprep.subr.mxu0 0.0
    %1252 = vmatpush1.msra.mxu0 0.0
    %1253 = vmatprep.subr.mxu0 0.0
    %1254 = vmatpush1.msra.mxu0 0.0
    %1255 = vmatprep.subr.mxu0 0.0
    %1256 = vmatpush1.msra.mxu0 0.0
    %1257 = vmatprep.subr.mxu0 0.0
    %1258 = vmatpush1.msra.mxu0 0.0
    %1259 = vmatprep.subr.mxu0 0.0
    %1260 = vmatpush1.msra.mxu0 0.0
    %1261 = vmatprep.subr.mxu0 0.0
    %1262 = vmatpush1.msra.mxu0 0.0
    %1263 = vmatprep.subr.mxu0 0.0
    %1264 = vmatpush1.msra.mxu0 0.0
    %1265 = vmatprep.subr.mxu0 0.0
    %1266 = vmatpush1.msra.mxu0 0.0
    %1267 = vmatprep.mubr.f32.mxu0 0.0
    %1268 = vmatmul.mubr.f32.gmra.mrb[0].mxu0 %v1201
    %v1269 = vpop.f32.mrb[0].mxu0
    %v1270 = vadd.f32 0.0, %v1269
    %v1271 = vpop.f32.mrb[0].mxu0
    %1272 = vdwg.mxu0
    %v1274 = vsel %vm194, %v1200, 0
    %1276 = vmatprep.subr.mxu0 0.0
    %1277 = vmatpush1.msra.mxu0 %v110
    %1278 = vmatprep.subr.mxu0 0.0
    %1279 = vmatpush1.msra.mxu0 %v111
    %1280 = vmatprep.subr.mxu0 0.0
    %1281 = vmatpush1.msra.mxu0 0.0
    %1282 = vmatprep.subr.mxu0 0.0
    %1283 = vmatpush1.msra.mxu0 0.0
    %1284 = vmatprep.subr.mxu0 0.0
    %1285 = vmatpush1.msra.mxu0 0.0
    %1286 = vmatprep.subr.mxu0 0.0
    %1287 = vmatpush1.msra.mxu0 0.0
    %1288 = vmatprep.subr.mxu0 0.0
    %1289 = vmatpush1.msra.mxu0 0.0
    %1290 = vmatprep.subr.mxu0 0.0
    %1291 = vmatpush1.msra.mxu0 0.0
    %1292 = vmatprep.subr.mxu0 0.0
    %1293 = vmatpush1.msra.mxu0 0.0
    %1294 = vmatprep.subr.mxu0 0.0
    %1295 = vmatpush1.msra.mxu0 0.0
    %1296 = vmatprep.subr.mxu0 0.0
    %1297 = vmatpush1.msra.mxu0 0.0
    %1298 = vmatprep.subr.mxu0 0.0
    %1299 = vmatpush1.msra.mxu0 0.0
    %1300 = vmatprep.subr.mxu0 0.0
    %1301 = vmatpush1.msra.mxu0 0.0
    %1302 = vmatprep.subr.mxu0 0.0
    %1303 = vmatpush1.msra.mxu0 0.0
    %1304 = vmatprep.subr.mxu0 0.0
    %1305 = vmatpush1.msra.mxu0 0.0
    %1306 = vmatprep.subr.mxu0 0.0
    %1307 = vmatpush1.msra.mxu0 0.0
    %1308 = vmatprep.subr.mxu0 0.0
    %1309 = vmatpush1.msra.mxu0 0.0
    %1310 = vmatprep.subr.mxu0 0.0
    %1311 = vmatpush1.msra.mxu0 0.0
    %1312 = vmatprep.subr.mxu0 0.0
    %1313 = vmatpush1.msra.mxu0 0.0
    %1314 = vmatprep.subr.mxu0 0.0
    %1315 = vmatpush1.msra.mxu0 0.0
    %1316 = vmatprep.subr.mxu0 0.0
    %1317 = vmatpush1.msra.mxu0 0.0
    %1318 = vmatprep.subr.mxu0 0.0
    %1319 = vmatpush1.msra.mxu0 0.0
    %1320 = vmatprep.subr.mxu0 0.0
    %1321 = vmatpush1.msra.mxu0 0.0
    %1322 = vmatprep.subr.mxu0 0.0
    %1323 = vmatpush1.msra.mxu0 0.0
    %1324 = vmatprep.subr.mxu0 0.0
    %1325 = vmatpush1.msra.mxu0 0.0
    %1326 = vmatprep.subr.mxu0 0.0
    %1327 = vmatpush1.msra.mxu0 0.0
    %1328 = vmatprep.subr.mxu0 0.0
    %1329 = vmatpush1.msra.mxu0 0.0
    %1330 = vmatprep.subr.mxu0 0.0
    %1331 = vmatpush1.msra.mxu0 0.0
    %1332 = vmatprep.subr.mxu0 0.0
    %1333 = vmatpush1.msra.mxu0 0.0
    %1334 = vmatprep.subr.mxu0 0.0
    %1335 = vmatpush1.msra.mxu0 0.0
    %1336 = vmatprep.subr.mxu0 0.0
    %1337 = vmatpush1.msra.mxu0 0.0
    %1338 = vmatprep.subr.mxu0 0.0
    %1339 = vmatpush1.msra.mxu0 0.0
    %1340 = vmatprep.mubr.f32.mxu0 0.0
    %1341 = vmatmul.mubr.f32.gmra.mrb[0].mxu0 %v1274
    %v1342 = vpop.f32.mrb[0].mxu0
    %v1343 = vadd.f32 %v1270, %v1342
    %v1344 = vpop.f32.mrb[0].mxu0
    %1345 = vdwg.mxu0
    %v1346 = vadd.f32 %v1343, %v272
    %v1347 = vxor.u32 %v1346, 2147483648
    %v1348 = vmul.f32 %v1347, 1.442695
    %v1349 = vpow.pop %v1348
    %v1350 = vadd.f32 %v1349, 1.0
    %v1351 = vrcp.pop %v1350
    %v1352 = vmul.f32 1.0, %v1351
    %v1353 = vtanh.pop %v1346
    %v1354 = vmul.f32 %v1352, %v1186
    %1356 = vrot.lane.b32.xlu0 %v1353, 32
    %v1357 = vpop.permute.xlu0 %1356
    %v1359 = vmul.f32 %v1352, %v1357
    %1361 = vrot.lane.b32.xlu0 %v1359, 32
    %v1362 = vpop.permute.xlu0 %1361
    %v1364 = vadd.f32 %v1354, %v1362
    %v1365 = vtanh.pop %v1364
    %1367 = vrot.lane.b32.xlu0 %v1365, 32
    %v1368 = vpop.permute.xlu0 %1367
    %v1370 = vmul.f32 %v1352, %v1368
    %1372 = vrot.lane.b32.xlu0 %v1370, 64
    %v1373 = vpop.permute.xlu0 %1372
    %s1375 = scalar_lea.vmem [#allocation11], 12
    %1376 = vst.msk [vmem:[%s1375] sm:$0x3] %vm307, %v1373
    %s1377 = scalar_lea.vmem [#allocation8], 14
    %v1378 = vld [vmem:[%s1377] sm:$0x3]
    %v1379 = vsel %vm120, %v1373, 0
    %1381 = vmatprep.subr.mxu0 0.0
    %1382 = vmatpush1.msra.mxu0 %v112
    %1383 = vmatprep.subr.mxu0 0.0
    %1384 = vmatpush1.msra.mxu0 %v113
    %1385 = vmatprep.subr.mxu0 0.0
    %1386 = vmatpush1.msra.mxu0 %v114
    %1387 = vmatprep.subr.mxu0 0.0
    %1388 = vmatpush1.msra.mxu0 %v115
    %1389 = vmatprep.subr.mxu0 0.0
    %1390 = vmatpush1.msra.mxu0 0.0
    %1391 = vmatprep.subr.mxu0 0.0
    %1392 = vmatpush1.msra.mxu0 0.0
    %1393 = vmatprep.subr.mxu0 0.0
    %1394 = vmatpush1.msra.mxu0 0.0
    %1395 = vmatprep.subr.mxu0 0.0
    %1396 = vmatpush1.msra.mxu0 0.0
    %1397 = vmatprep.subr.mxu0 0.0
    %1398 = vmatpush1.msra.mxu0 0.0
    %1399 = vmatprep.subr.mxu0 0.0
    %1400 = vmatpush1.msra.mxu0 0.0
    %1401 = vmatprep.subr.mxu0 0.0
    %1402 = vmatpush1.msra.mxu0 0.0
    %1403 = vmatprep.subr.mxu0 0.0
    %1404 = vmatpush1.msra.mxu0 0.0
    %1405 = vmatprep.subr.mxu0 0.0
    %1406 = vmatpush1.msra.mxu0 0.0
    %1407 = vmatprep.subr.mxu0 0.0
    %1408 = vmatpush1.msra.mxu0 0.0
    %1409 = vmatprep.subr.mxu0 0.0
    %1410 = vmatpush1.msra.mxu0 0.0
    %1411 = vmatprep.subr.mxu0 0.0
    %1412 = vmatpush1.msra.mxu0 0.0
    %1413 = vmatprep.subr.mxu0 0.0
    %1414 = vmatpush1.msra.mxu0 0.0
    %1415 = vmatprep.subr.mxu0 0.0
    %1416 = vmatpush1.msra.mxu0 0.0
    %1417 = vmatprep.subr.mxu0 0.0
    %1418 = vmatpush1.msra.mxu0 0.0
    %1419 = vmatprep.subr.mxu0 0.0
    %1420 = vmatpush1.msra.mxu0 0.0
    %1421 = vmatprep.subr.mxu0 0.0
    %1422 = vmatpush1.msra.mxu0 0.0
    %1423 = vmatprep.subr.mxu0 0.0
    %1424 = vmatpush1.msra.mxu0 0.0
    %1425 = vmatprep.subr.mxu0 0.0
    %1426 = vmatpush1.msra.mxu0 0.0
    %1427 = vmatprep.subr.mxu0 0.0
    %1428 = vmatpush1.msra.mxu0 0.0
    %1429 = vmatprep.subr.mxu0 0.0
    %1430 = vmatpush1.msra.mxu0 0.0
    %1431 = vmatprep.subr.mxu0 0.0
    %1432 = vmatpush1.msra.mxu0 0.0
    %1433 = vmatprep.subr.mxu0 0.0
    %1434 = vmatpush1.msra.mxu0 0.0
    %1435 = vmatprep.subr.mxu0 0.0
    %1436 = vmatpush1.msra.mxu0 0.0
    %1437 = vmatprep.subr.mxu0 0.0
    %1438 = vmatpush1.msra.mxu0 0.0
    %1439 = vmatprep.subr.mxu0 0.0
    %1440 = vmatpush1.msra.mxu0 0.0
    %1441 = vmatprep.subr.mxu0 0.0
    %1442 = vmatpush1.msra.mxu0 0.0
    %1443 = vmatprep.subr.mxu0 0.0
    %1444 = vmatpush1.msra.mxu0 0.0
    %1445 = vmatprep.mubr.f32.mxu0 0.0
    %1446 = vmatmul.mubr.f32.gmra.mrb[0].mxu0 %v1379
    %v1447 = vpop.f32.mrb[0].mxu0
    %v1448 = vadd.f32 0.0, %v1447
    %v1449 = vpop.f32.mrb[0].mxu0
    %1450 = vdwg.mxu0
    %v1452 = vsel %vm194, %v1378, 0
    %1454 = vmatprep.subr.mxu0 0.0
    %1455 = vmatpush1.msra.mxu0 %v110
    %1456 = vmatprep.subr.mxu0 0.0
    %1457 = vmatpush1.msra.mxu0 %v111
    %1458 = vmatprep.subr.mxu0 0.0
    %1459 = vmatpush1.msra.mxu0 0.0
    %1460 = vmatprep.subr.mxu0 0.0
    %1461 = vmatpush1.msra.mxu0 0.0
    %1462 = vmatprep.subr.mxu0 0.0
    %1463 = vmatpush1.msra.mxu0 0.0
    %1464 = vmatprep.subr.mxu0 0.0
    %1465 = vmatpush1.msra.mxu0 0.0
    %1466 = vmatprep.subr.mxu0 0.0
    %1467 = vmatpush1.msra.mxu0 0.0
    %1468 = vmatprep.subr.mxu0 0.0
    %1469 = vmatpush1.msra.mxu0 0.0
    %1470 = vmatprep.subr.mxu0 0.0
    %1471 = vmatpush1.msra.mxu0 0.0
    %1472 = vmatprep.subr.mxu0 0.0
    %1473 = vmatpush1.msra.mxu0 0.0
    %1474 = vmatprep.subr.mxu0 0.0
    %1475 = vmatpush1.msra.mxu0 0.0
    %1476 = vmatprep.subr.mxu0 0.0
    %1477 = vmatpush1.msra.mxu0 0.0
    %1478 = vmatprep.subr.mxu0 0.0
    %1479 = vmatpush1.msra.mxu0 0.0
    %1480 = vmatprep.subr.mxu0 0.0
    %1481 = vmatpush1.msra.mxu0 0.0
    %1482 = vmatprep.subr.mxu0 0.0
    %1483 = vmatpush1.msra.mxu0 0.0
    %1484 = vmatprep.subr.mxu0 0.0
    %1485 = vmatpush1.msra.mxu0 0.0
    %1486 = vmatprep.subr.mxu0 0.0
    %1487 = vmatpush1.msra.mxu0 0.0
    %1488 = vmatprep.subr.mxu0 0.0
    %1489 = vmatpush1.msra.mxu0 0.0
    %1490 = vmatprep.subr.mxu0 0.0
    %1491 = vmatpush1.msra.mxu0 0.0
    %1492 = vmatprep.subr.mxu0 0.0
    %1493 = vmatpush1.msra.mxu0 0.0
    %1494 = vmatprep.subr.mxu0 0.0
    %1495 = vmatpush1.msra.mxu0 0.0
    %1496 = vmatprep.subr.mxu0 0.0
    %1497 = vmatpush1.msra.mxu0 0.0
    %1498 = vmatprep.subr.mxu0 0.0
    %1499 = vmatpush1.msra.mxu0 0.0
    %1500 = vmatprep.subr.mxu0 0.0
    %1501 = vmatpush1.msra.mxu0 0.0
    %1502 = vmatprep.subr.mxu0 0.0
    %1503 = vmatpush1.msra.mxu0 0.0
    %1504 = vmatprep.subr.mxu0 0.0
    %1505 = vmatpush1.msra.mxu0 0.0
    %1506 = vmatprep.subr.mxu0 0.0
    %1507 = vmatpush1.msra.mxu0 0.0
    %1508 = vmatprep.subr.mxu0 0.0
    %1509 = vmatpush1.msra.mxu0 0.0
    %1510 = vmatprep.subr.mxu0 0.0
    %1511 = vmatpush1.msra.mxu0 0.0
    %1512 = vmatprep.subr.mxu0 0.0
    %1513 = vmatpush1.msra.mxu0 0.0
    %1514 = vmatprep.subr.mxu0 0.0
    %1515 = vmatpush1.msra.mxu0 0.0
    %1516 = vmatprep.subr.mxu0 0.0
    %1517 = vmatpush1.msra.mxu0 0.0
    %1518 = vmatprep.mubr.f32.mxu0 0.0
    %1519 = vmatmul.mubr.f32.gmra.mrb[0].mxu0 %v1452
    %v1520 = vpop.f32.mrb[0].mxu0
    %v1521 = vadd.f32 %v1448, %v1520
    %v1522 = vpop.f32.mrb[0].mxu0
    %1523 = vdwg.mxu0
    %v1524 = vadd.f32 %v1521, %v272
    %v1525 = vxor.u32 %v1524, 2147483648
    %v1526 = vmul.f32 %v1525, 1.442695
    %v1527 = vpow.pop %v1526
    %v1528 = vadd.f32 %v1527, 1.0
    %v1529 = vrcp.pop %v1528
    %v1530 = vmul.f32 1.0, %v1529
    %v1531 = vtanh.pop %v1524
    %v1532 = vmul.f32 %v1530, %v1364
    %1534 = vrot.lane.b32.xlu0 %v1531, 32
    %v1535 = vpop.permute.xlu0 %1534
    %v1537 = vmul.f32 %v1530, %v1535
    %1539 = vrot.lane.b32.xlu0 %v1537, 32
    %v1540 = vpop.permute.xlu0 %1539
    %v1542 = vadd.f32 %v1532, %v1540
    %v1543 = vtanh.pop %v1542
    %1545 = vrot.lane.b32.xlu0 %v1543, 32
    %v1546 = vpop.permute.xlu0 %1545
    %v1548 = vmul.f32 %v1530, %v1546
    %1550 = vrot.lane.b32.xlu0 %v1548, 64
    %v1551 = vpop.permute.xlu0 %1550
    %s1553 = scalar_lea.vmem [#allocation11], 14
    %1554 = vst.msk [vmem:[%s1553] sm:$0x3] %vm307, %v1551
    %1555 = vst.msk [vmem:[#allocation2] sm:$0x3] %vm307, %v1551
    %1557 = vrot.lane.b32.xlu0 %v1542, 96
    %v1558 = vpop.permute.xlu0 %1557
    %1560 = vst.msk [vmem:[#allocation3] sm:$0x3] %vm307, %v1558
    // Predicated region
    $region52: #{tpu_custom_call.1} parent=1 // pred_check
      _
    $region53: #{tpu_custom_call.1} parent=1 // pred_check_branch
      %1562 = sbr.rel (0) target = $region55
    $region54: #{tpu_custom_call.1} parent=1 // pred_region
      %s1564 = ssub.s32 256, 256
      %1565 = vsyncadd [#allocation10], %s1564
      %s1566 = sshll.u32 [#allocation11], 4
      %s1567 = int_to_ptr.vmem [resolvable:$true] %s1566
      %1572 = dma.vmem_to_hbm [thread:$0]  %s1567, 256, %s4, [#allocation10], 32, 32, 2
    $region55: #{tpu_custom_call.1} parent=1 // pred_fallthru
      _
    // Predicated region
    $region56: #{tpu_custom_call.1} parent=1 // pred_check
      _
    $region57: #{tpu_custom_call.1} parent=1 // pred_check_branch
      %1574 = sbr.rel (0) target = $region59
    $region58: #{tpu_custom_call.1} parent=1 // pred_region
      %1575 = dma.done [#allocation10], 256
    $region59: #{tpu_custom_call.1} parent=1 // pred_fallthru
      _
    %1576 = vsyncpa [#allocation9], 1
    %1577 = vsyncpa [#allocation10], 1
  %1578 = vsyncmov [#allocation7]
  %s1579 = vpop.sfrf %1578
  %p1580 = scmp.eq.s32.totalorder %s1579, 0
  %p1581 = pneg %p1580
  %1583 = shalt.err (%p1581)
  %s1584 = scalar_lea.sflag [#allocation7], 1
  %1585 = vsyncmov %s1584
  %s1586 = vpop.sfrf %1585
  %p1587 = scmp.eq.s32.totalorder %s1586, 0
  %p1588 = pneg %p1587
  %1590 = shalt.err (%p1588)
  %s1591 = scalar_lea.sflag [#allocation7], 2
  %1592 = vsyncmov %s1591
  %s1593 = vpop.sfrf %1592
  %p1594 = scmp.eq.s32.totalorder %s1593, 0
  %p1595 = pneg %p1594
  %1597 = shalt.err (%p1595)

</llo_original>
